<compile_context>
chip_gen: v6e
topology: v6e:2x2x1
jax: 0.10.0
libtpu: 0.0.40
codegen_flags: <defaults>
</compile_context>

<pallas_src>
import functools

import jax
import jax.numpy as jnp
from jax import lax
from jax.experimental import pallas as pl
from jax.experimental.pallas import tpu as pltpu


# ------------------------------ fused kernel --------------------------------

def _fused_predictor_kernel(*refs, conv_params, group_sizes):
    """refs = (x_ref, w0, b0, w1, b1, w2, b2, w_head, b_head, o_ref).

    x_ref:  (T0, 1)    time on sublanes, channels on lanes
    w_i:    (K*Cin, Cout)   b_i: (1, Cout)
    w_head: (C_last, F)     b_head: (1, F)
    o_ref:  (T_last, F)
    """
    x_ref = refs[0]
    o_ref = refs[-1]
    wb = refs[1:-1]

    h = x_ref[...].astype(jnp.float32)                     # (T0, 1)

    for li, (ksz, pad, stride) in enumerate(conv_params):
        w = wb[2 * li][...]                                # (K*Cin, Cout)
        b = wb[2 * li + 1][...]                            # (1, Cout)
        t_in, c_in = h.shape
        c_out = w.shape[1]

        # zero-pad the time axis (sublane concat, stays in VMEM)
        if pad > 0:
            zrow = jnp.zeros((pad, c_in), jnp.float32)
            h_pad = jnp.concatenate([zrow, h, zrow], axis=0)
        else:
            h_pad = h
        t_conv = t_in + 2 * pad - ksz + 1                  # full-rate conv length

        # full-rate conv as K shifted contiguous-slice matmuls
        acc = None
        for k in range(ksz):
            lhs = h_pad[k:k + t_conv, :]                   # (t_conv, Cin)
            w_k = w[k * c_in:(k + 1) * c_in, :]            # (Cin, Cout)
            if c_in == 1:
                term = lhs * w_k                           # outer product (VPU)
            else:
                term = jnp.dot(lhs, w_k, preferred_element_type=jnp.float32)
            acc = term if acc is None else acc + term

        # apply the stride with a 0/1 selection matmul (no strided loads)
        t_out = (t_in + 2 * pad - ksz) // stride + 1
        if stride != 1:
            row = lax.broadcasted_iota(jnp.int32, (t_out, t_conv), 0)
            col = lax.broadcasted_iota(jnp.int32, (t_out, t_conv), 1)
            sel = (col == row * stride).astype(jnp.float32)
            y = jnp.dot(sel, acc, preferred_element_type=jnp.float32)
        else:
            y = acc

        y = y + b
        # Mish = y * tanh(softplus(y)), numerically stable, kept in f32
        sp = jnp.maximum(y, 0.0) + jnp.log1p(jnp.exp(-jnp.abs(y)))
        h = y * jnp.tanh(sp)

    # ---------------- head: 1x1 conv + per-group L2 normalize ----------------
    w_head = wb[-2][...]                                   # (C_last, F)
    b_head = wb[-1][...]                                   # (1, F)
    f = jnp.dot(h, w_head, preferred_element_type=jnp.float32) + b_head
    f_sz = f.shape[1]

    # block-diagonal same-group mask (static group boundaries, built via iota)
    bounds, cum = [], 0
    for sz in group_sizes[:-1]:
        cum += sz
        bounds.append(cum)
    ci = lax.broadcasted_iota(jnp.int32, (f_sz, f_sz), 0)
    cj = lax.broadcasted_iota(jnp.int32, (f_sz, f_sz), 1)
    gi = jnp.zeros((f_sz, f_sz), jnp.int32)
    gj = jnp.zeros((f_sz, f_sz), jnp.int32)
    for bnd in bounds:
        gi = gi + (ci >= bnd).astype(jnp.int32)
        gj = gj + (cj >= bnd).astype(jnp.int32)
    same_group = (gi == gj).astype(jnp.float32)            # (F, F) 0/1 mask

    denom = jnp.dot(f * f, same_group, preferred_element_type=jnp.float32)
    # F.normalize: x / max(||x||, 1e-12)  ==  x * rsqrt(max(sum_sq, 1e-24))
    scale = lax.rsqrt(jnp.maximum(denom, 1e-24))
    o_ref[...] = (f * scale).astype(o_ref.dtype)


# ------------------------------- JAX wrapper ---------------------------------

def prepare_params(params):
    """One-time flattening of PyTorch-layout weights into kernel matrices."""
    flat = []
    for (w, b) in params["blocks"]:
        c_out, c_in, ksz = w.shape
        # [k*Cin + cin, cout] = w[cout, cin, k]
        flat.append(jnp.transpose(w, (2, 1, 0)).reshape(ksz * c_in, c_out))
        flat.append(b.reshape(1, c_out))
    w1, b1 = params["head"]
    f_sz = w1.shape[0]
    flat.append(jnp.transpose(w1[:, :, 0], (1, 0)))        # (C_last, F)
    flat.append(b1.reshape(1, f_sz))
    return flat


def predictor_forward(x, flat_params, config):
    """x: (B, T) float32 -> feature (B, F, T_out) (PyTorch NCW convention)."""
    B, t0 = x.shape
    conv_params = tuple(zip(config["kernel_size_list"],
                            config["padding_size_list"],
                            config["scale_list"]))
    group_sizes = tuple(config["group_sizes"])
    f_sz = sum(group_sizes)

    t_last = t0
    for (ksz, pad, stride) in conv_params:
        t_last = (t_last + 2 * pad - ksz) // stride + 1

    kernel = functools.partial(_fused_predictor_kernel,
                               conv_params=conv_params,
                               group_sizes=group_sizes)

    in_specs = [pl.BlockSpec((None, t0, 1), lambda b: (b, 0, 0))]
    for arr in flat_params:
        in_specs.append(pl.BlockSpec(arr.shape, lambda b: (0, 0)))

    out_btf = pl.pallas_call(
        kernel,
        out_shape=jax.ShapeDtypeStruct((B, t_last, f_sz), jnp.float32),
        grid=(B,),
        in_specs=in_specs,
        out_specs=pl.BlockSpec((None, t_last, f_sz), lambda b: (b, 0, 0)),
        compiler_params=pltpu.CompilerParams(
            dimension_semantics=("parallel",)),
    )(x[:, :, None], *flat_params)

    return jnp.transpose(out_btf, (0, 2, 1))               # single NCW transpose


# --------------------------- parameter construction -------------------------

def init_params(key, config):
    blocks = []
    in_ch = 1
    for i, out_ch in enumerate(config["hidden_size_list"]):
        K = config["kernel_size_list"][i]
        k1, k2, k3, key = jax.random.split(key, 4)
        # weight_norm reparameterization: w = g * v / ||v|| (per out channel)
        v = 0.3 * jax.random.normal(k1, (out_ch, in_ch, K), jnp.float32)
        g = 1.0 + 0.1 * jax.random.normal(k2, (out_ch, 1, 1), jnp.float32)
        b = 0.1 * jax.random.normal(k3, (out_ch,), jnp.float32)
        vn = jnp.sqrt(jnp.sum(v * v, axis=(1, 2), keepdims=True))
        blocks.append((g * v / vn, b))
        in_ch = out_ch
    k1, k2, key = jax.random.split(key, 3)
    f_sz = sum(config["group_sizes"])
    w1 = 0.2 * jax.random.normal(k1, (f_sz, in_ch, 1), jnp.float32)
    b1 = 0.1 * jax.random.normal(k2, (f_sz,), jnp.float32)
    return {"blocks": blocks, "head": (w1, b1)}


# ------------------------------ pure-JAX reference ---------------------------

def ref_forward(x, params, config):
    h = x[:, None, :]
    for (w, b), p, s in zip(params["blocks"],
                            config["padding_size_list"],
                            config["scale_list"]):
        h = lax.conv_general_dilated(h, w, window_strides=(s,),
                                     padding=[(p, p)],
                                     dimension_numbers=("NCH", "OIH", "NCH"))
        h = h + b[None, :, None]
        sp = jnp.maximum(h, 0.0) + jnp.log1p(jnp.exp(-jnp.abs(h)))
        h = h * jnp.tanh(sp)
    w1, b1 = params["head"]
    f = lax.conv_general_dilated(h, w1, (1,), [(0, 0)],
                                 dimension_numbers=("NCH", "OIH", "NCH"))
    f = f + b1[None, :, None]
    outs, start = [], 0
    for sz in config["group_sizes"]:
        g = f[:, start:start + sz, :]
        nrm = jnp.sqrt(jnp.sum(g * g, axis=1, keepdims=True))
        outs.append(g / jnp.maximum(nrm, 1e-12))
        start += sz
    return jnp.concatenate(outs, axis=1)


# ---------------------------------- main -------------------------------------

if __name__ == "__main__":
    config = dict(
        hidden_size_list=[8, 16, 32],
        scale_list=[2, 2, 2],
        kernel_size_list=[5, 5, 5],
        padding_size_list=[2, 2, 2],
        # voiced_feature_size, f0_feature_size, phoneme_feature_size
        group_sizes=[2, 4, 10],
    )

    key = jax.random.PRNGKey(0)
    k_x, k_p = jax.random.split(key)
    x = jax.random.normal(k_x, (2, 64), jnp.float32)       # (batch, samples)
    params = init_params(k_p, config)
    flat_params = prepare_params(params)                   # one-time weight prep

    fwd = jax.jit(lambda xx, fp: predictor_forward(xx, fp, config))
    out = jax.block_until_ready(fwd(x, flat_params))

    ref = jax.block_until_ready(ref_forward(x, params, config))
    assert out.shape == ref.shape == (2, sum(config["group_sizes"]), 8), out.shape
    max_err = float(jnp.max(jnp.abs(out - ref)))
    assert jnp.allclose(out, ref, rtol=1e-4, atol=2e-5), max_err

    print("KERNEL_OK")
</pallas_src>

<mosaic_0001>
module attributes {stable_mosaic.version = 11 : i64} {
  func.func @_fused_predictor_kernel(%arg0: i32, %arg1: memref<1x64x1xf32, #tpu.memory_space<vmem>>, %arg2: memref<5x8xf32, #tpu.memory_space<vmem>>, %arg3: memref<1x8xf32, #tpu.memory_space<vmem>>, %arg4: memref<40x16xf32, #tpu.memory_space<vmem>>, %arg5: memref<1x16xf32, #tpu.memory_space<vmem>>, %arg6: memref<80x32xf32, #tpu.memory_space<vmem>>, %arg7: memref<1x32xf32, #tpu.memory_space<vmem>>, %arg8: memref<32x16xf32, #tpu.memory_space<vmem>>, %arg9: memref<1x16xf32, #tpu.memory_space<vmem>>, %arg10: memref<1x8x16xf32, #tpu.memory_space<vmem>>) attributes {dimension_semantics = [#tpu.dimension_semantics<parallel>], iteration_bounds = array<i64: 2>, scalar_prefetch = 0 : i64, scratch_operands = 0 : i64, tpu.core_type = #tpu.core_type<tc>, window_params = [{transform_indices = @transform_0, window_bounds = array<i64: 1, 64, 1>}, {pipeline_mode = #tpu.pipeline_mode<synchronous>, transform_indices = @transform_1, window_bounds = array<i64: 5, 8>}, {pipeline_mode = #tpu.pipeline_mode<synchronous>, transform_indices = @transform_2, window_bounds = array<i64: 1, 8>}, {pipeline_mode = #tpu.pipeline_mode<synchronous>, transform_indices = @transform_3, window_bounds = array<i64: 40, 16>}, {pipeline_mode = #tpu.pipeline_mode<synchronous>, transform_indices = @transform_4, window_bounds = array<i64: 1, 16>}, {pipeline_mode = #tpu.pipeline_mode<synchronous>, transform_indices = @transform_5, window_bounds = array<i64: 80, 32>}, {pipeline_mode = #tpu.pipeline_mode<synchronous>, transform_indices = @transform_6, window_bounds = array<i64: 1, 32>}, {pipeline_mode = #tpu.pipeline_mode<synchronous>, transform_indices = @transform_7, window_bounds = array<i64: 32, 16>}, {pipeline_mode = #tpu.pipeline_mode<synchronous>, transform_indices = @transform_8, window_bounds = array<i64: 1, 16>}, {transform_indices = @transform_9, window_bounds = array<i64: 1, 8, 16>}]} {
    %c0 = arith.constant 0 : index
    %c0_0 = arith.constant 0 : index
    %c0_1 = arith.constant 0 : index
    %0 = vector.load %arg1[%c0, %c0_0, %c0_1] : memref<1x64x1xf32, #tpu.memory_space<vmem>>, vector<1x64x1xf32>
    %1 = vector.shape_cast %0 : vector<1x64x1xf32> to vector<64x1xf32>
    %c0_2 = arith.constant 0 : index
    %c0_3 = arith.constant 0 : index
    %2 = vector.load %arg2[%c0_2, %c0_3] : memref<5x8xf32, #tpu.memory_space<vmem>>, vector<5x8xf32>
    %c0_4 = arith.constant 0 : index
    %c0_5 = arith.constant 0 : index
    %3 = vector.load %arg3[%c0_4, %c0_5] : memref<1x8xf32, #tpu.memory_space<vmem>>, vector<1x8xf32>
    %cst = arith.constant 0.000000e+00 : f32
    %4 = vector.broadcast %cst : f32 to vector<2x1xf32>
    %5 = tpu.concatenate %4, %1, %4 in 0 : vector<2x1xf32>, vector<64x1xf32>, vector<2x1xf32> -> vector<68x1xf32>
    %6 = vector.extract_strided_slice %5 {offsets = [0, 0], sizes = [64, 1], strides = [1, 1]} : vector<68x1xf32> to vector<64x1xf32>
    %7 = vector.extract_strided_slice %2 {offsets = [0, 0], sizes = [1, 8], strides = [1, 1]} : vector<5x8xf32> to vector<1x8xf32>
    %8 = vector.broadcast %6 : vector<64x1xf32> to vector<64x8xf32>
    %9 = vector.broadcast %7 : vector<1x8xf32> to vector<64x8xf32>
    %10 = arith.mulf %8, %9 : vector<64x8xf32>
    %11 = vector.extract_strided_slice %5 {offsets = [1, 0], sizes = [64, 1], strides = [1, 1]} : vector<68x1xf32> to vector<64x1xf32>
    %12 = vector.extract_strided_slice %2 {offsets = [1, 0], sizes = [1, 8], strides = [1, 1]} : vector<5x8xf32> to vector<1x8xf32>
    %13 = vector.broadcast %11 : vector<64x1xf32> to vector<64x8xf32>
    %14 = vector.broadcast %12 : vector<1x8xf32> to vector<64x8xf32>
    %15 = arith.mulf %13, %14 : vector<64x8xf32>
    %16 = arith.addf %10, %15 : vector<64x8xf32>
    %17 = vector.extract_strided_slice %5 {offsets = [2, 0], sizes = [64, 1], strides = [1, 1]} : vector<68x1xf32> to vector<64x1xf32>
    %18 = vector.extract_strided_slice %2 {offsets = [2, 0], sizes = [1, 8], strides = [1, 1]} : vector<5x8xf32> to vector<1x8xf32>
    %19 = vector.broadcast %17 : vector<64x1xf32> to vector<64x8xf32>
    %20 = vector.broadcast %18 : vector<1x8xf32> to vector<64x8xf32>
    %21 = arith.mulf %19, %20 : vector<64x8xf32>
    %22 = arith.addf %16, %21 : vector<64x8xf32>
    %23 = vector.extract_strided_slice %5 {offsets = [3, 0], sizes = [64, 1], strides = [1, 1]} : vector<68x1xf32> to vector<64x1xf32>
    %24 = vector.extract_strided_slice %2 {offsets = [3, 0], sizes = [1, 8], strides = [1, 1]} : vector<5x8xf32> to vector<1x8xf32>
    %25 = vector.broadcast %23 : vector<64x1xf32> to vector<64x8xf32>
    %26 = vector.broadcast %24 : vector<1x8xf32> to vector<64x8xf32>
    %27 = arith.mulf %25, %26 : vector<64x8xf32>
    %28 = arith.addf %22, %27 : vector<64x8xf32>
    %29 = vector.extract_strided_slice %5 {offsets = [4, 0], sizes = [64, 1], strides = [1, 1]} : vector<68x1xf32> to vector<64x1xf32>
    %30 = vector.extract_strided_slice %2 {offsets = [4, 0], sizes = [1, 8], strides = [1, 1]} : vector<5x8xf32> to vector<1x8xf32>
    %31 = vector.broadcast %29 : vector<64x1xf32> to vector<64x8xf32>
    %32 = vector.broadcast %30 : vector<1x8xf32> to vector<64x8xf32>
    %33 = arith.mulf %31, %32 : vector<64x8xf32>
    %34 = arith.addf %28, %33 : vector<64x8xf32>
    %35 = tpu.iota {dimensions = array<i32: 0>} : vector<32x64xi32>
    %36 = tpu.iota {dimensions = array<i32: 1>} : vector<32x64xi32>
    %c2_i32 = arith.constant 2 : i32
    %37 = vector.broadcast %c2_i32 : i32 to vector<32x64xi32>
    %38 = arith.muli %35, %37 : vector<32x64xi32>
    %39 = arith.cmpi eq, %36, %38 : vector<32x64xi32>
    %40 = arith.extui %39 : vector<32x64xi1> to vector<32x64xi32>
    %41 = arith.sitofp %40 : vector<32x64xi32> to vector<32x64xf32>
    %cst_6 = arith.constant dense<0.000000e+00> : vector<32x8xf32>
    %42 = tpu.matmul %41, %34, %cst_6 {dimension_numbers = #tpu.dot_dimension_numbers<[1], [0], [0], [1], [0, 0, 1, 1], [], []>} : vector<32x64xf32>, vector<64x8xf32>, vector<32x8xf32> -> vector<32x8xf32>
    %43 = vector.broadcast %3 : vector<1x8xf32> to vector<32x8xf32>
    %44 = arith.addf %42, %43 : vector<32x8xf32>
    %cst_7 = arith.constant 0.000000e+00 : f32
    %45 = vector.broadcast %cst_7 : f32 to vector<32x8xf32>
    %46 = arith.maximumf %44, %45 : vector<32x8xf32>
    %47 = math.absf %44 : vector<32x8xf32>
    %cst_8 = arith.constant 0.000000e+00 : f32
    %48 = vector.broadcast %cst_8 : f32 to vector<32x8xf32>
    %49 = arith.subf %48, %47 : vector<32x8xf32>
    %50 = math.exp %49 : vector<32x8xf32>
    %51 = math.log1p %50 : vector<32x8xf32>
    %52 = arith.addf %46, %51 : vector<32x8xf32>
    %53 = math.tanh %52 : vector<32x8xf32>
    %54 = arith.mulf %44, %53 : vector<32x8xf32>
    %c0_9 = arith.constant 0 : index
    %c0_10 = arith.constant 0 : index
    %55 = vector.load %arg4[%c0_9, %c0_10] : memref<40x16xf32, #tpu.memory_space<vmem>>, vector<40x16xf32>
    %c0_11 = arith.constant 0 : index
    %c0_12 = arith.constant 0 : index
    %56 = vector.load %arg5[%c0_11, %c0_12] : memref<1x16xf32, #tpu.memory_space<vmem>>, vector<1x16xf32>
    %cst_13 = arith.constant 0.000000e+00 : f32
    %57 = vector.broadcast %cst_13 : f32 to vector<2x8xf32>
    %58 = tpu.concatenate %57, %54, %57 in 0 : vector<2x8xf32>, vector<32x8xf32>, vector<2x8xf32> -> vector<36x8xf32>
    %59 = vector.extract_strided_slice %58 {offsets = [0, 0], sizes = [32, 8], strides = [1, 1]} : vector<36x8xf32> to vector<32x8xf32>
    %60 = vector.extract_strided_slice %55 {offsets = [0, 0], sizes = [8, 16], strides = [1, 1]} : vector<40x16xf32> to vector<8x16xf32>
    %cst_14 = arith.constant dense<0.000000e+00> : vector<32x16xf32>
    %61 = tpu.matmul %59, %60, %cst_14 {dimension_numbers = #tpu.dot_dimension_numbers<[1], [0], [0], [1], [0, 0, 1, 1], [], []>} : vector<32x8xf32>, vector<8x16xf32>, vector<32x16xf32> -> vector<32x16xf32>
    %62 = vector.extract_strided_slice %58 {offsets = [1, 0], sizes = [32, 8], strides = [1, 1]} : vector<36x8xf32> to vector<32x8xf32>
    %63 = vector.extract_strided_slice %55 {offsets = [8, 0], sizes = [8, 16], strides = [1, 1]} : vector<40x16xf32> to vector<8x16xf32>
    %cst_15 = arith.constant dense<0.000000e+00> : vector<32x16xf32>
    %64 = tpu.matmul %62, %63, %cst_15 {dimension_numbers = #tpu.dot_dimension_numbers<[1], [0], [0], [1], [0, 0, 1, 1], [], []>} : vector<32x8xf32>, vector<8x16xf32>, vector<32x16xf32> -> vector<32x16xf32>
    %65 = arith.addf %61, %64 : vector<32x16xf32>
    %66 = vector.extract_strided_slice %58 {offsets = [2, 0], sizes = [32, 8], strides = [1, 1]} : vector<36x8xf32> to vector<32x8xf32>
    %67 = vector.extract_strided_slice %55 {offsets = [16, 0], sizes = [8, 16], strides = [1, 1]} : vector<40x16xf32> to vector<8x16xf32>
    %cst_16 = arith.constant dense<0.000000e+00> : vector<32x16xf32>
    %68 = tpu.matmul %66, %67, %cst_16 {dimension_numbers = #tpu.dot_dimension_numbers<[1], [0], [0], [1], [0, 0, 1, 1], [], []>} : vector<32x8xf32>, vector<8x16xf32>, vector<32x16xf32> -> vector<32x16xf32>
    %69 = arith.addf %65, %68 : vector<32x16xf32>
    %70 = vector.extract_strided_slice %58 {offsets = [3, 0], sizes = [32, 8], strides = [1, 1]} : vector<36x8xf32> to vector<32x8xf32>
    %71 = vector.extract_strided_slice %55 {offsets = [24, 0], sizes = [8, 16], strides = [1, 1]} : vector<40x16xf32> to vector<8x16xf32>
    %cst_17 = arith.constant dense<0.000000e+00> : vector<32x16xf32>
    %72 = tpu.matmul %70, %71, %cst_17 {dimension_numbers = #tpu.dot_dimension_numbers<[1], [0], [0], [1], [0, 0, 1, 1], [], []>} : vector<32x8xf32>, vector<8x16xf32>, vector<32x16xf32> -> vector<32x16xf32>
    %73 = arith.addf %69, %72 : vector<32x16xf32>
    %74 = vector.extract_strided_slice %58 {offsets = [4, 0], sizes = [32, 8], strides = [1, 1]} : vector<36x8xf32> to vector<32x8xf32>
    %75 = vector.extract_strided_slice %55 {offsets = [32, 0], sizes = [8, 16], strides = [1, 1]} : vector<40x16xf32> to vector<8x16xf32>
    %cst_18 = arith.constant dense<0.000000e+00> : vector<32x16xf32>
    %76 = tpu.matmul %74, %75, %cst_18 {dimension_numbers = #tpu.dot_dimension_numbers<[1], [0], [0], [1], [0, 0, 1, 1], [], []>} : vector<32x8xf32>, vector<8x16xf32>, vector<32x16xf32> -> vector<32x16xf32>
    %77 = arith.addf %73, %76 : vector<32x16xf32>
    %78 = tpu.iota {dimensions = array<i32: 0>} : vector<16x32xi32>
    %79 = tpu.iota {dimensions = array<i32: 1>} : vector<16x32xi32>
    %c2_i32_19 = arith.constant 2 : i32
    %80 = vector.broadcast %c2_i32_19 : i32 to vector<16x32xi32>
    %81 = arith.muli %78, %80 : vector<16x32xi32>
    %82 = arith.cmpi eq, %79, %81 : vector<16x32xi32>
    %83 = arith.extui %82 : vector<16x32xi1> to vector<16x32xi32>
    %84 = arith.sitofp %83 : vector<16x32xi32> to vector<16x32xf32>
    %cst_20 = arith.constant dense<0.000000e+00> : vector<16x16xf32>
    %85 = tpu.matmul %84, %77, %cst_20 {dimension_numbers = #tpu.dot_dimension_numbers<[1], [0], [0], [1], [0, 0, 1, 1], [], []>} : vector<16x32xf32>, vector<32x16xf32>, vector<16x16xf32> -> vector<16x16xf32>
    %86 = vector.broadcast %56 : vector<1x16xf32> to vector<16x16xf32>
    %87 = arith.addf %85, %86 : vector<16x16xf32>
    %cst_21 = arith.constant 0.000000e+00 : f32
    %88 = vector.broadcast %cst_21 : f32 to vector<16x16xf32>
    %89 = arith.maximumf %87, %88 : vector<16x16xf32>
    %90 = math.absf %87 : vector<16x16xf32>
    %cst_22 = arith.constant 0.000000e+00 : f32
    %91 = vector.broadcast %cst_22 : f32 to vector<16x16xf32>
    %92 = arith.subf %91, %90 : vector<16x16xf32>
    %93 = math.exp %92 : vector<16x16xf32>
    %94 = math.log1p %93 : vector<16x16xf32>
    %95 = arith.addf %89, %94 : vector<16x16xf32>
    %96 = math.tanh %95 : vector<16x16xf32>
    %97 = arith.mulf %87, %96 : vector<16x16xf32>
    %c0_23 = arith.constant 0 : index
    %c0_24 = arith.constant 0 : index
    %98 = vector.load %arg6[%c0_23, %c0_24] : memref<80x32xf32, #tpu.memory_space<vmem>>, vector<80x32xf32>
    %c0_25 = arith.constant 0 : index
    %c0_26 = arith.constant 0 : index
    %99 = vector.load %arg7[%c0_25, %c0_26] : memref<1x32xf32, #tpu.memory_space<vmem>>, vector<1x32xf32>
    %cst_27 = arith.constant 0.000000e+00 : f32
    %100 = vector.broadcast %cst_27 : f32 to vector<2x16xf32>
    %101 = tpu.concatenate %100, %97, %100 in 0 : vector<2x16xf32>, vector<16x16xf32>, vector<2x16xf32> -> vector<20x16xf32>
    %102 = vector.extract_strided_slice %101 {offsets = [0, 0], sizes = [16, 16], strides = [1, 1]} : vector<20x16xf32> to vector<16x16xf32>
    %103 = vector.extract_strided_slice %98 {offsets = [0, 0], sizes = [16, 32], strides = [1, 1]} : vector<80x32xf32> to vector<16x32xf32>
    %cst_28 = arith.constant dense<0.000000e+00> : vector<16x32xf32>
    %104 = tpu.matmul %102, %103, %cst_28 {dimension_numbers = #tpu.dot_dimension_numbers<[1], [0], [0], [1], [0, 0, 1, 1], [], []>} : vector<16x16xf32>, vector<16x32xf32>, vector<16x32xf32> -> vector<16x32xf32>
    %105 = vector.extract_strided_slice %101 {offsets = [1, 0], sizes = [16, 16], strides = [1, 1]} : vector<20x16xf32> to vector<16x16xf32>
    %106 = vector.extract_strided_slice %98 {offsets = [16, 0], sizes = [16, 32], strides = [1, 1]} : vector<80x32xf32> to vector<16x32xf32>
    %cst_29 = arith.constant dense<0.000000e+00> : vector<16x32xf32>
    %107 = tpu.matmul %105, %106, %cst_29 {dimension_numbers = #tpu.dot_dimension_numbers<[1], [0], [0], [1], [0, 0, 1, 1], [], []>} : vector<16x16xf32>, vector<16x32xf32>, vector<16x32xf32> -> vector<16x32xf32>
    %108 = arith.addf %104, %107 : vector<16x32xf32>
    %109 = vector.extract_strided_slice %101 {offsets = [2, 0], sizes = [16, 16], strides = [1, 1]} : vector<20x16xf32> to vector<16x16xf32>
    %110 = vector.extract_strided_slice %98 {offsets = [32, 0], sizes = [16, 32], strides = [1, 1]} : vector<80x32xf32> to vector<16x32xf32>
    %cst_30 = arith.constant dense<0.000000e+00> : vector<16x32xf32>
    %111 = tpu.matmul %109, %110, %cst_30 {dimension_numbers = #tpu.dot_dimension_numbers<[1], [0], [0], [1], [0, 0, 1, 1], [], []>} : vector<16x16xf32>, vector<16x32xf32>, vector<16x32xf32> -> vector<16x32xf32>
    %112 = arith.addf %108, %111 : vector<16x32xf32>
    %113 = vector.extract_strided_slice %101 {offsets = [3, 0], sizes = [16, 16], strides = [1, 1]} : vector<20x16xf32> to vector<16x16xf32>
    %114 = vector.extract_strided_slice %98 {offsets = [48, 0], sizes = [16, 32], strides = [1, 1]} : vector<80x32xf32> to vector<16x32xf32>
    %cst_31 = arith.constant dense<0.000000e+00> : vector<16x32xf32>
    %115 = tpu.matmul %113, %114, %cst_31 {dimension_numbers = #tpu.dot_dimension_numbers<[1], [0], [0], [1], [0, 0, 1, 1], [], []>} : vector<16x16xf32>, vector<16x32xf32>, vector<16x32xf32> -> vector<16x32xf32>
    %116 = arith.addf %112, %115 : vector<16x32xf32>
    %117 = vector.extract_strided_slice %101 {offsets = [4, 0], sizes = [16, 16], strides = [1, 1]} : vector<20x16xf32> to vector<16x16xf32>
    %118 = vector.extract_strided_slice %98 {offsets = [64, 0], sizes = [16, 32], strides = [1, 1]} : vector<80x32xf32> to vector<16x32xf32>
    %cst_32 = arith.constant dense<0.000000e+00> : vector<16x32xf32>
    %119 = tpu.matmul %117, %118, %cst_32 {dimension_numbers = #tpu.dot_dimension_numbers<[1], [0], [0], [1], [0, 0, 1, 1], [], []>} : vector<16x16xf32>, vector<16x32xf32>, vector<16x32xf32> -> vector<16x32xf32>
    %120 = arith.addf %116, %119 : vector<16x32xf32>
    %121 = tpu.iota {dimensions = array<i32: 0>} : vector<8x16xi32>
    %122 = tpu.iota {dimensions = array<i32: 1>} : vector<8x16xi32>
    %c2_i32_33 = arith.constant 2 : i32
    %123 = vector.broadcast %c2_i32_33 : i32 to vector<8x16xi32>
    %124 = arith.muli %121, %123 : vector<8x16xi32>
    %125 = arith.cmpi eq, %122, %124 : vector<8x16xi32>
    %126 = arith.extui %125 : vector<8x16xi1> to vector<8x16xi32>
    %127 = arith.sitofp %126 : vector<8x16xi32> to vector<8x16xf32>
    %cst_34 = arith.constant dense<0.000000e+00> : vector<8x32xf32>
    %128 = tpu.matmul %127, %120, %cst_34 {dimension_numbers = #tpu.dot_dimension_numbers<[1], [0], [0], [1], [0, 0, 1, 1], [], []>} : vector<8x16xf32>, vector<16x32xf32>, vector<8x32xf32> -> vector<8x32xf32>
    %129 = vector.broadcast %99 : vector<1x32xf32> to vector<8x32xf32>
    %130 = arith.addf %128, %129 : vector<8x32xf32>
    %cst_35 = arith.constant 0.000000e+00 : f32
    %131 = vector.broadcast %cst_35 : f32 to vector<8x32xf32>
    %132 = arith.maximumf %130, %131 : vector<8x32xf32>
    %133 = math.absf %130 : vector<8x32xf32>
    %cst_36 = arith.constant 0.000000e+00 : f32
    %134 = vector.broadcast %cst_36 : f32 to vector<8x32xf32>
    %135 = arith.subf %134, %133 : vector<8x32xf32>
    %136 = math.exp %135 : vector<8x32xf32>
    %137 = math.log1p %136 : vector<8x32xf32>
    %138 = arith.addf %132, %137 : vector<8x32xf32>
    %139 = math.tanh %138 : vector<8x32xf32>
    %140 = arith.mulf %130, %139 : vector<8x32xf32>
    %c0_37 = arith.constant 0 : index
    %c0_38 = arith.constant 0 : index
    %141 = vector.load %arg8[%c0_37, %c0_38] : memref<32x16xf32, #tpu.memory_space<vmem>>, vector<32x16xf32>
    %c0_39 = arith.constant 0 : index
    %c0_40 = arith.constant 0 : index
    %142 = vector.load %arg9[%c0_39, %c0_40] : memref<1x16xf32, #tpu.memory_space<vmem>>, vector<1x16xf32>
    %cst_41 = arith.constant dense<0.000000e+00> : vector<8x16xf32>
    %143 = tpu.matmul %140, %141, %cst_41 {dimension_numbers = #tpu.dot_dimension_numbers<[1], [0], [0], [1], [0, 0, 1, 1], [], []>} : vector<8x32xf32>, vector<32x16xf32>, vector<8x16xf32> -> vector<8x16xf32>
    %144 = vector.broadcast %142 : vector<1x16xf32> to vector<8x16xf32>
    %145 = arith.addf %143, %144 : vector<8x16xf32>
    %146 = tpu.iota {dimensions = array<i32: 0>} : vector<16x16xi32>
    %147 = tpu.iota {dimensions = array<i32: 1>} : vector<16x16xi32>
    %c0_i32 = arith.constant 0 : i32
    %148 = vector.broadcast %c0_i32 : i32 to vector<16x16xi32>
    %c0_i32_42 = arith.constant 0 : i32
    %149 = vector.broadcast %c0_i32_42 : i32 to vector<16x16xi32>
    %c2_i32_43 = arith.constant 2 : i32
    %150 = vector.broadcast %c2_i32_43 : i32 to vector<16x16xi32>
    %151 = arith.cmpi sge, %146, %150 : vector<16x16xi32>
    %152 = arith.extui %151 : vector<16x16xi1> to vector<16x16xi32>
    %153 = arith.addi %148, %152 : vector<16x16xi32>
    %c2_i32_44 = arith.constant 2 : i32
    %154 = vector.broadcast %c2_i32_44 : i32 to vector<16x16xi32>
    %155 = arith.cmpi sge, %147, %154 : vector<16x16xi32>
    %156 = arith.extui %155 : vector<16x16xi1> to vector<16x16xi32>
    %157 = arith.addi %149, %156 : vector<16x16xi32>
    %c6_i32 = arith.constant 6 : i32
    %158 = vector.broadcast %c6_i32 : i32 to vector<16x16xi32>
    %159 = arith.cmpi sge, %146, %158 : vector<16x16xi32>
    %160 = arith.extui %159 : vector<16x16xi1> to vector<16x16xi32>
    %161 = arith.addi %153, %160 : vector<16x16xi32>
    %c6_i32_45 = arith.constant 6 : i32
    %162 = vector.broadcast %c6_i32_45 : i32 to vector<16x16xi32>
    %163 = arith.cmpi sge, %147, %162 : vector<16x16xi32>
    %164 = arith.extui %163 : vector<16x16xi1> to vector<16x16xi32>
    %165 = arith.addi %157, %164 : vector<16x16xi32>
    %166 = arith.cmpi eq, %161, %165 : vector<16x16xi32>
    %167 = arith.extui %166 : vector<16x16xi1> to vector<16x16xi32>
    %168 = arith.sitofp %167 : vector<16x16xi32> to vector<16x16xf32>
    %169 = arith.mulf %145, %145 : vector<8x16xf32>
    %cst_46 = arith.constant dense<0.000000e+00> : vector<8x16xf32>
    %170 = tpu.matmul %169, %168, %cst_46 {dimension_numbers = #tpu.dot_dimension_numbers<[1], [0], [0], [1], [0, 0, 1, 1], [], []>} : vector<8x16xf32>, vector<16x16xf32>, vector<8x16xf32> -> vector<8x16xf32>
    %cst_47 = arith.constant 1.000000e-24 : f32
    %171 = vector.broadcast %cst_47 : f32 to vector<8x16xf32>
    %172 = arith.maximumf %170, %171 : vector<8x16xf32>
    %173 = math.rsqrt %172 : vector<8x16xf32>
    %174 = arith.mulf %145, %173 : vector<8x16xf32>
    %c0_48 = arith.constant 0 : index
    %c0_49 = arith.constant 0 : index
    %c0_50 = arith.constant 0 : index
    %175 = vector.load %arg10[%c0_48, %c0_49, %c0_50] : memref<1x8x16xf32, #tpu.memory_space<vmem>>, vector<1x8x16xf32>
    %176 = vector.shape_cast %175 : vector<1x8x16xf32> to vector<8x16xf32>
    %177 = vector.shape_cast %174 : vector<8x16xf32> to vector<1x8x16xf32>
    tpu.vector_store %arg10[%c0_48, %c0_49, %c0_50], %177 {strides = array<i32>} : memref<1x8x16xf32, #tpu.memory_space<vmem>>, vector<1x8x16xf32>,
    return
  }
  func.func @transform_0(%arg0: i32) -> (i32, i32, i32) {
    %c0_i32 = arith.constant 0 : i32
    %c0_i32_0 = arith.constant 0 : i32
    %c0_i32_1 = arith.constant 0 : i32
    return %arg0, %c0_i32, %c0_i32_0 : i32, i32, i32
  }
  func.func @transform_1(%arg0: i32) -> (i32, i32) {
    %c0_i32 = arith.constant 0 : i32
    %c0_i32_0 = arith.constant 0 : i32
    %c0_i32_1 = arith.constant 0 : i32
    return %c0_i32, %c0_i32_0 : i32, i32
  }
  func.func @transform_2(%arg0: i32) -> (i32, i32) {
    %c0_i32 = arith.constant 0 : i32
    %c0_i32_0 = arith.constant 0 : i32
    %c0_i32_1 = arith.constant 0 : i32
    return %c0_i32, %c0_i32_0 : i32, i32
  }
  func.func @transform_3(%arg0: i32) -> (i32, i32) {
    %c0_i32 = arith.constant 0 : i32
    %c0_i32_0 = arith.constant 0 : i32
    %c0_i32_1 = arith.constant 0 : i32
    return %c0_i32, %c0_i32_0 : i32, i32
  }
  func.func @transform_4(%arg0: i32) -> (i32, i32) {
    %c0_i32 = arith.constant 0 : i32
    %c0_i32_0 = arith.constant 0 : i32
    %c0_i32_1 = arith.constant 0 : i32
    return %c0_i32, %c0_i32_0 : i32, i32
  }
  func.func @transform_5(%arg0: i32) -> (i32, i32) {
    %c0_i32 = arith.constant 0 : i32
    %c0_i32_0 = arith.constant 0 : i32
    %c0_i32_1 = arith.constant 0 : i32
    return %c0_i32, %c0_i32_0 : i32, i32
  }
  func.func @transform_6(%arg0: i32) -> (i32, i32) {
    %c0_i32 = arith.constant 0 : i32
    %c0_i32_0 = arith.constant 0 : i32
    %c0_i32_1 = arith.constant 0 : i32
    return %c0_i32, %c0_i32_0 : i32, i32
  }
  func.func @transform_7(%arg0: i32) -> (i32, i32) {
    %c0_i32 = arith.constant 0 : i32
    %c0_i32_0 = arith.constant 0 : i32
    %c0_i32_1 = arith.constant 0 : i32
    return %c0_i32, %c0_i32_0 : i32, i32
  }
  func.func @transform_8(%arg0: i32) -> (i32, i32) {
    %c0_i32 = arith.constant 0 : i32
    %c0_i32_0 = arith.constant 0 : i32
    %c0_i32_1 = arith.constant 0 : i32
    return %c0_i32, %c0_i32_0 : i32, i32
  }
  func.func @transform_9(%arg0: i32) -> (i32, i32, i32) {
    %c0_i32 = arith.constant 0 : i32
    %c0_i32_0 = arith.constant 0 : i32
    %c0_i32_1 = arith.constant 0 : i32
    return %arg0, %c0_i32, %c0_i32_0 : i32, i32, i32
  }
}

</mosaic_0001>

<llo_original>
// kernel: _lambda_.1
$region0: #{_lambda_.1}
  #allocation0 [shape = 'u32[]', space=smem, size = 0x4, offset = 0x4, fixed_abs, tag = 'smem constant byte address 0x4 - core index']
  #allocation1 [shape = 'u32[144,128]{1,0:T(1,128)}', space=vmem, size = 0x12000, scoped, tag = 'internal scratch']
  %s0 = inlined_call_operand.vmem [shape: f32[2,64,1], index: 0, kind: input, shape index: {}]
  %s1 = inlined_call_operand.vmem [shape: f32[5,8], index: 1, kind: input, shape index: {}]
  %s2 = inlined_call_operand.vmem [shape: f32[1,8], index: 2, kind: input, shape index: {}]
  %s3 = inlined_call_operand.vmem [shape: f32[40,16], index: 3, kind: input, shape index: {}]
  %s4 = inlined_call_operand.vmem [shape: f32[1,16], index: 4, kind: input, shape index: {}]
  %s5 = inlined_call_operand.vmem [shape: f32[80,32], index: 5, kind: input, shape index: {}]
  %s6 = inlined_call_operand.vmem [shape: f32[1,32], index: 6, kind: input, shape index: {}]
  %s7 = inlined_call_operand.vmem [shape: f32[32,16], index: 7, kind: input, shape index: {}]
  %s8 = inlined_call_operand.vmem [shape: f32[1,16], index: 8, kind: input, shape index: {}]
  %s9 = inlined_call_operand.hbm [shape: f32[2,8,16], index: 9, kind: output, shape index: {}]
  %s10 = sld [smem:[#allocation0]]
  $region69: #{_lambda_.1} parent=0
    _
  %s12 = ssub.s32 1, %s10
  %s13 = scalar_select 0, %s12, %s10
  $region1: #{_lambda_.1} parent=0
    #allocation2 [shape = 'u8[8192]{0}', space=vmem, size = 0x2000, scoped, tag = 'output window, operand 0']
    #allocation3 [shape = 's32[2]{0}', space=sflag, size = 0x8, scoped, tag = 'scoped memory for _lambda_.1']
    %14 = vsyncpa [#allocation3], 0
    %s15 = scalar_lea.sflag [#allocation3], 1
    %16 = vsyncpa %s15, 0
    loop: start=0, step=1, limit=4
    $region2: #{_lambda_.1} parent=1 // loop_pre_header
      _
    $region3: #{_lambda_.1} parent=1 // loop_header
      %s18 = sphi 0, %s22
      %p19 = scmp.ge.s32.totalorder %s18, 4
      %s28 = sphi 0, %s30
      %s31 = sphi 0, %s28
      %s32 = sphi 0, %s31
      %s48 = sphi 0, %s32
      %s52 = sphi 0, %s52
      %s54 = sphi 0, %s52
      %s55 = sphi 0, %s54
      %s69 = sphi 0, %s55
      %s73 = sphi 0, %s73
      %s75 = sphi 0, %s73
      %s76 = sphi 0, %s75
      %s90 = sphi 0, %s76
      %s94 = sphi 0, %s94
      %s96 = sphi 0, %s94
      %s97 = sphi 0, %s96
      %s111 = sphi 0, %s97
      %s115 = sphi 0, %s115
      %s117 = sphi 0, %s115
      %s118 = sphi 0, %s117
      %s132 = sphi 0, %s118
      %s136 = sphi 0, %s136
      %s138 = sphi 0, %s136
      %s139 = sphi 0, %s138
      %s153 = sphi 0, %s139
      %s157 = sphi 0, %s157
      %s159 = sphi 0, %s157
      %s160 = sphi 0, %s159
      %s174 = sphi 0, %s160
      %s178 = sphi 0, %s178
      %s180 = sphi 0, %s178
      %s181 = sphi 0, %s180
      %s195 = sphi 0, %s181
      %s199 = sphi 0, %s199
      %s201 = sphi 0, %s199
      %s202 = sphi 0, %s201
      %s216 = sphi 0, %s202
      %s222 = sphi 0, %s224
      %s225 = sphi 0, %s222
      %s226 = sphi 0, %s225
      %s242 = sphi 0, %s226
    $region4: #{_lambda_.1} parent=1 // loop_header_branch
      %21 = sbr.rel (%p19) target = $region8
    $region5: #{_lambda_.1} parent=1 // loop_body
      %s23 = ssub.s32 %s18, 1
      %s24 = ssub.s32 %s18, 2
      %s25 = sadd.s32 %s18, 1
      %s26 = ssub.s32 %s18, %s25
      %p27 = scmp.eq.s32.totalorder %s26, 0
      %s29 = sadd.s32 %s28, 1
      %s30 = scalar_select %p27, %s28, %s29
      %p33 = pneg %p27
      %p34 = scmp.eq.s32.totalorder %s18, 1
      %p35 = por %p33, %p34
      %p36 = scmp.ne.s32.totalorder %s28, %s31
      %p37 = scmp.eq.s32.totalorder %s18, 0
      %p38 = por %p36, %p37
      %p39 = scmp.ne.s32.totalorder %s28, %s31
      %p40 = scmp.eq.s32.totalorder %s23, 1
      %p41 = por %p39, %p40
      %p42 = scmp.ne.s32.totalorder %s31, %s32
      %p43 = scmp.eq.s32.totalorder %s23, 0
      %p44 = por %p42, %p43
      %p45 = scmp.ne.s32.totalorder %s31, %s32
      %p46 = scmp.eq.s32.totalorder %s24, 1
      %p47 = por %p45, %p46
      %p49 = scmp.ne.s32.totalorder %s32, %s48
      %p50 = scmp.eq.s32.totalorder %s24, 0
      %p51 = por %p49, %p50
      %s53 = sadd.s32 %s52, 1
      %p56 = scmp.eq.s32.totalorder %s18, 1
      %p57 = scmp.ne.s32.totalorder %s52, %s54
      %p58 = scmp.eq.s32.totalorder %s18, 0
      %p59 = por %p57, %p58
      %p60 = scmp.ne.s32.totalorder %s52, %s54
      %p61 = scmp.eq.s32.totalorder %s23, 1
      %p62 = por %p60, %p61
      %p63 = scmp.ne.s32.totalorder %s54, %s55
      %p64 = scmp.eq.s32.totalorder %s23, 0
      %p65 = por %p63, %p64
      %p66 = scmp.ne.s32.totalorder %s54, %s55
      %p67 = scmp.eq.s32.totalorder %s24, 1
      %p68 = por %p66, %p67
      %p70 = scmp.ne.s32.totalorder %s55, %s69
      %p71 = scmp.eq.s32.totalorder %s24, 0
      %p72 = por %p70, %p71
      %s74 = sadd.s32 %s73, 1
      %p77 = scmp.eq.s32.totalorder %s18, 1
      %p78 = scmp.ne.s32.totalorder %s73, %s75
      %p79 = scmp.eq.s32.totalorder %s18, 0
      %p80 = por %p78, %p79
      %p81 = scmp.ne.s32.totalorder %s73, %s75
      %p82 = scmp.eq.s32.totalorder %s23, 1
      %p83 = por %p81, %p82
      %p84 = scmp.ne.s32.totalorder %s75, %s76
      %p85 = scmp.eq.s32.totalorder %s23, 0
      %p86 = por %p84, %p85
      %p87 = scmp.ne.s32.totalorder %s75, %s76
      %p88 = scmp.eq.s32.totalorder %s24, 1
      %p89 = por %p87, %p88
      %p91 = scmp.ne.s32.totalorder %s76, %s90
      %p92 = scmp.eq.s32.totalorder %s24, 0
      %p93 = por %p91, %p92
      %s95 = sadd.s32 %s94, 1
      %p98 = scmp.eq.s32.totalorder %s18, 1
      %p99 = scmp.ne.s32.totalorder %s94, %s96
      %p100 = scmp.eq.s32.totalorder %s18, 0
      %p101 = por %p99, %p100
      %p102 = scmp.ne.s32.totalorder %s94, %s96
      %p103 = scmp.eq.s32.totalorder %s23, 1
      %p104 = por %p102, %p103
      %p105 = scmp.ne.s32.totalorder %s96, %s97
      %p106 = scmp.eq.s32.totalorder %s23, 0
      %p107 = por %p105, %p106
      %p108 = scmp.ne.s32.totalorder %s96, %s97
      %p109 = scmp.eq.s32.totalorder %s24, 1
      %p110 = por %p108, %p109
      %p112 = scmp.ne.s32.totalorder %s97, %s111
      %p113 = scmp.eq.s32.totalorder %s24, 0
      %p114 = por %p112, %p113
      %s116 = sadd.s32 %s115, 1
      %p119 = scmp.eq.s32.totalorder %s18, 1
      %p120 = scmp.ne.s32.totalorder %s115, %s117
      %p121 = scmp.eq.s32.totalorder %s18, 0
      %p122 = por %p120, %p121
      %p123 = scmp.ne.s32.totalorder %s115, %s117
      %p124 = scmp.eq.s32.totalorder %s23, 1
      %p125 = por %p123, %p124
      %p126 = scmp.ne.s32.totalorder %s117, %s118
      %p127 = scmp.eq.s32.totalorder %s23, 0
      %p128 = por %p126, %p127
      %p129 = scmp.ne.s32.totalorder %s117, %s118
      %p130 = scmp.eq.s32.totalorder %s24, 1
      %p131 = por %p129, %p130
      %p133 = scmp.ne.s32.totalorder %s118, %s132
      %p134 = scmp.eq.s32.totalorder %s24, 0
      %p135 = por %p133, %p134
      %s137 = sadd.s32 %s136, 1
      %p140 = scmp.eq.s32.totalorder %s18, 1
      %p141 = scmp.ne.s32.totalorder %s136, %s138
      %p142 = scmp.eq.s32.totalorder %s18, 0
      %p143 = por %p141, %p142
      %p144 = scmp.ne.s32.totalorder %s136, %s138
      %p145 = scmp.eq.s32.totalorder %s23, 1
      %p146 = por %p144, %p145
      %p147 = scmp.ne.s32.totalorder %s138, %s139
      %p148 = scmp.eq.s32.totalorder %s23, 0
      %p149 = por %p147, %p148
      %p150 = scmp.ne.s32.totalorder %s138, %s139
      %p151 = scmp.eq.s32.totalorder %s24, 1
      %p152 = por %p150, %p151
      %p154 = scmp.ne.s32.totalorder %s139, %s153
      %p155 = scmp.eq.s32.totalorder %s24, 0
      %p156 = por %p154, %p155
      %s158 = sadd.s32 %s157, 1
      %p161 = scmp.eq.s32.totalorder %s18, 1
      %p162 = scmp.ne.s32.totalorder %s157, %s159
      %p163 = scmp.eq.s32.totalorder %s18, 0
      %p164 = por %p162, %p163
      %p165 = scmp.ne.s32.totalorder %s157, %s159
      %p166 = scmp.eq.s32.totalorder %s23, 1
      %p167 = por %p165, %p166
      %p168 = scmp.ne.s32.totalorder %s159, %s160
      %p169 = scmp.eq.s32.totalorder %s23, 0
      %p170 = por %p168, %p169
      %p171 = scmp.ne.s32.totalorder %s159, %s160
      %p172 = scmp.eq.s32.totalorder %s24, 1
      %p173 = por %p171, %p172
      %p175 = scmp.ne.s32.totalorder %s160, %s174
      %p176 = scmp.eq.s32.totalorder %s24, 0
      %p177 = por %p175, %p176
      %s179 = sadd.s32 %s178, 1
      %p182 = scmp.eq.s32.totalorder %s18, 1
      %p183 = scmp.ne.s32.totalorder %s178, %s180
      %p184 = scmp.eq.s32.totalorder %s18, 0
      %p185 = por %p183, %p184
      %p186 = scmp.ne.s32.totalorder %s178, %s180
      %p187 = scmp.eq.s32.totalorder %s23, 1
      %p188 = por %p186, %p187
      %p189 = scmp.ne.s32.totalorder %s180, %s181
      %p190 = scmp.eq.s32.totalorder %s23, 0
      %p191 = por %p189, %p190
      %p192 = scmp.ne.s32.totalorder %s180, %s181
      %p193 = scmp.eq.s32.totalorder %s24, 1
      %p194 = por %p192, %p193
      %p196 = scmp.ne.s32.totalorder %s181, %s195
      %p197 = scmp.eq.s32.totalorder %s24, 0
      %p198 = por %p196, %p197
      %s200 = sadd.s32 %s199, 1
      %p203 = scmp.eq.s32.totalorder %s18, 1
      %p204 = scmp.ne.s32.totalorder %s199, %s201
      %p205 = scmp.eq.s32.totalorder %s18, 0
      %p206 = por %p204, %p205
      %p207 = scmp.ne.s32.totalorder %s199, %s201
      %p208 = scmp.eq.s32.totalorder %s23, 1
      %p209 = por %p207, %p208
      %p210 = scmp.ne.s32.totalorder %s201, %s202
      %p211 = scmp.eq.s32.totalorder %s23, 0
      %p212 = por %p210, %p211
      %p213 = scmp.ne.s32.totalorder %s201, %s202
      %p214 = scmp.eq.s32.totalorder %s24, 1
      %p215 = por %p213, %p214
      %p217 = scmp.ne.s32.totalorder %s202, %s216
      %p218 = scmp.eq.s32.totalorder %s24, 0
      %p219 = por %p217, %p218
      %s220 = ssub.s32 %s18, %s25
      %p221 = scmp.eq.s32.totalorder %s220, 0
      %s223 = sadd.s32 %s222, 1
      %s224 = scalar_select %p221, %s222, %s223
      %p227 = pneg %p221
      %p228 = scmp.eq.s32.totalorder %s18, 1
      %p229 = por %p227, %p228
      %p230 = scmp.ne.s32.totalorder %s222, %s225
      %p231 = scmp.eq.s32.totalorder %s18, 0
      %p232 = por %p230, %p231
      %p233 = scmp.ne.s32.totalorder %s222, %s225
      %p234 = scmp.eq.s32.totalorder %s23, 1
      %p235 = por %p233, %p234
      %p236 = scmp.ne.s32.totalorder %s225, %s226
      %p237 = scmp.eq.s32.totalorder %s23, 0
      %p238 = por %p236, %p237
      %p239 = scmp.ne.s32.totalorder %s225, %s226
      %p240 = scmp.eq.s32.totalorder %s24, 1
      %p241 = por %p239, %p240
      %p243 = scmp.ne.s32.totalorder %s226, %s242
      %p244 = scmp.eq.s32.totalorder %s24, 0
      %p245 = por %p243, %p244
      %p246 = scmp.le.s32.totalorder 1, %s18
      %p247 = scmp.lt.s32.totalorder %s18, 3
      %p248 = pnand %p246, %p247
      %p249 = pneg %p248
      // Predicated region
      $region9: #{_lambda_.1} parent=5 // pred_check
        _
      $region10: #{_lambda_.1} parent=5 // pred_check_branch
        %251 = sbr.rel (%p248) target = $region12
      $region11: #{_lambda_.1} parent=5 // pred_region
        %s252 = ssub.s32 %s18, 1
        // Predicated region
        $region13: #{_lambda_.1} parent=11 // pred_check
          %p253 = pneg %p65
        $region14: #{_lambda_.1} parent=11 // pred_check_branch
          %255 = sbr.rel (%p253) target = $region16
        $region15: #{_lambda_.1} parent=11 // pred_region
          _
        $region16: #{_lambda_.1} parent=11 // pred_fallthru
          _
        // Predicated region
        $region17: #{_lambda_.1} parent=11 // pred_check
          %p256 = pneg %p86
        $region18: #{_lambda_.1} parent=11 // pred_check_branch
          %258 = sbr.rel (%p256) target = $region20
        $region19: #{_lambda_.1} parent=11 // pred_region
          _
        $region20: #{_lambda_.1} parent=11 // pred_fallthru
          _
        // Predicated region
        $region21: #{_lambda_.1} parent=11 // pred_check
          %p259 = pneg %p107
        $region22: #{_lambda_.1} parent=11 // pred_check_branch
          %261 = sbr.rel (%p259) target = $region24
        $region23: #{_lambda_.1} parent=11 // pred_region
          _
        $region24: #{_lambda_.1} parent=11 // pred_fallthru
          _
        // Predicated region
        $region25: #{_lambda_.1} parent=11 // pred_check
          %p262 = pneg %p128
        $region26: #{_lambda_.1} parent=11 // pred_check_branch
          %264 = sbr.rel (%p262) target = $region28
        $region27: #{_lambda_.1} parent=11 // pred_region
          _
        $region28: #{_lambda_.1} parent=11 // pred_fallthru
          _
        // Predicated region
        $region29: #{_lambda_.1} parent=11 // pred_check
          %p265 = pneg %p149
        $region30: #{_lambda_.1} parent=11 // pred_check_branch
          %267 = sbr.rel (%p265) target = $region32
        $region31: #{_lambda_.1} parent=11 // pred_region
          _
        $region32: #{_lambda_.1} parent=11 // pred_fallthru
          _
        // Predicated region
        $region33: #{_lambda_.1} parent=11 // pred_check
          %p268 = pneg %p170
        $region34: #{_lambda_.1} parent=11 // pred_check_branch
          %270 = sbr.rel (%p268) target = $region36
        $region35: #{_lambda_.1} parent=11 // pred_region
          _
        $region36: #{_lambda_.1} parent=11 // pred_fallthru
          _
        // Predicated region
        $region37: #{_lambda_.1} parent=11 // pred_check
          %p271 = pneg %p191
        $region38: #{_lambda_.1} parent=11 // pred_check_branch
          %273 = sbr.rel (%p271) target = $region40
        $region39: #{_lambda_.1} parent=11 // pred_region
          _
        $region40: #{_lambda_.1} parent=11 // pred_fallthru
          _
        // Predicated region
        $region41: #{_lambda_.1} parent=11 // pred_check
          %p274 = pneg %p212
        $region42: #{_lambda_.1} parent=11 // pred_check_branch
          %276 = sbr.rel (%p274) target = $region44
        $region43: #{_lambda_.1} parent=11 // pred_region
          _
        $region44: #{_lambda_.1} parent=11 // pred_fallthru
          _
      $region12: #{_lambda_.1} parent=5 // pred_fallthru
        _
      %p277 = scmp.lt.s32.totalorder %s18, 2
      // Predicated region
      $region45: #{_lambda_.1} parent=5 // pred_check
        %p278 = pneg %p277
      $region46: #{_lambda_.1} parent=5 // pred_check_branch
        %280 = sbr.rel (%p278) target = $region48
      $region47: #{_lambda_.1} parent=5 // pred_region
        // Predicated region
        $region49: #{_lambda_.1} parent=47 // pred_check
          %p281 = pneg %p38
        $region50: #{_lambda_.1} parent=47 // pred_check_branch
          %283 = sbr.rel (%p281) target = $region52
        $region51: #{_lambda_.1} parent=47 // pred_region
          %p284 = scmp.lt.s32.totalorder %s18, 1
          %s285 = scalar_select %p284, %s18, 1
          %s286 = smul.addr %s285, 8
          %s287 = smul.addr %s286, 8
          %s288 = scalar_lea.vmem %s0, %s287
        $region52: #{_lambda_.1} parent=47 // pred_fallthru
          _
      $region48: #{_lambda_.1} parent=5 // pred_fallthru
        _
      %p289 = scmp.le.s32.totalorder 1, %s18
      %p290 = scmp.lt.s32.totalorder %s18, 3
      %p291 = pnand %p289, %p290
      %p292 = pneg %p291
      // Predicated region
      $region53: #{_lambda_.1} parent=5 // pred_check
        _
      $region54: #{_lambda_.1} parent=5 // pred_check_branch
        %294 = sbr.rel (%p291) target = $region56
      $region55: #{_lambda_.1} parent=5 // pred_region
        %s295 = ssub.s32 %s18, 1
        %p296 = scmp.lt.s32.totalorder %s23, 1
        %s297 = scalar_select %p296, %s23, 1
        %s298 = smul.addr %s297, 8
        %s299 = smul.addr %s298, 8
        %s300 = scalar_lea.vmem %s0, %s299
        %p301 = pneg %p44
        %p302 = pneg %p41
        %p303 = pneg %p65
        %p304 = pneg %p62
        %p305 = pneg %p86
        %p306 = pneg %p83
        %p307 = pneg %p107
        %p308 = pneg %p104
        %p309 = pneg %p128
        %p310 = pneg %p125
        %p311 = pneg %p149
        %p312 = pneg %p146
        %p313 = pneg %p170
        %p314 = pneg %p167
        %p315 = pneg %p191
        %p316 = pneg %p188
        %p317 = pneg %p212
        %p318 = pneg %p209
        %p319 = pneg %p238
        %p320 = pneg %p235
        %s321 = sand.u32 %s225, 1
        %s322 = scalar_lea.sflag [#allocation3], %s321
        %s323 = sand.u32 %s225, 1
        %s324 = smul.addr %s323, 8
        %s325 = scalar_lea.vmem [#allocation2], %s324
        %p326 = scmp.lt.s32.totalorder %s23, 1
        %s327 = scalar_select %p326, %s23, 1
        %s328 = smul.addr %s327, 8
        %s329 = smul.addr %s328, 8
        %s330 = scalar_lea.vmem %s0, %s329
        %v331 = vld [vmem:[%s330] sm:$0xff]
        %v332 = vld [vmem:[%s330 + $0x8] sm:$0xff]
        %v333 = vld [vmem:[%s330 + $0x10] sm:$0xff]
        %v334 = vld [vmem:[%s330 + $0x18] sm:$0xff]
        %v335 = vld [vmem:[%s330 + $0x20] sm:$0xff]
        %v336 = vld [vmem:[%s330 + $0x28] sm:$0xff]
        %v337 = vld [vmem:[%s330 + $0x30] sm:$0xff]
        %v338 = vld [vmem:[%s330 + $0x38] sm:$0xff]
        %v339 = vld [vmem:[%s1] sm:$0x1f]
        %v340 = vld [vmem:[%s2] sm:$0x1]
        %vm349 = vcmask 1041408
        %v350 = vrot.slane %v331, 6
        %v351 = vrot.slane %v332, 6
        %v352 = vsel %vm349, %v350, %v351
        %v353 = vrot.slane %v333, 6
        %v354 = vsel %vm349, %v351, %v353
        %v355 = vrot.slane %v334, 6
        %v356 = vsel %vm349, %v353, %v355
        %v357 = vrot.slane %v335, 6
        %v358 = vsel %vm349, %v355, %v357
        %v359 = vrot.slane %v336, 6
        %v360 = vsel %vm349, %v357, %v359
        %v361 = vrot.slane %v337, 6
        %v362 = vsel %vm349, %v359, %v361
        %v363 = vrot.slane %v338, 6
        %v364 = vsel %vm349, %v361, %v363
        %v367 = vsel %vm349, 0.0, %v350
        %v368 = vsel %vm349, %v363, 0.0
        %370 = vset.pattern.permute.xlu0 0
        %371 = vperm.xlu0 %370, %v367
        %v372 = vpop.permute.xlu0 %371
        %374 = vset.pattern.permute.xlu0 0
        %375 = vperm.xlu0 %374, %v352
        %v376 = vpop.permute.xlu0 %375
        %378 = vset.pattern.permute.xlu0 0
        %379 = vperm.xlu0 %378, %v354
        %v380 = vpop.permute.xlu0 %379
        %382 = vset.pattern.permute.xlu0 0
        %383 = vperm.xlu0 %382, %v356
        %v384 = vpop.permute.xlu0 %383
        %386 = vset.pattern.permute.xlu0 0
        %387 = vperm.xlu0 %386, %v358
        %v388 = vpop.permute.xlu0 %387
        %390 = vset.pattern.permute.xlu0 0
        %391 = vperm.xlu0 %390, %v360
        %v392 = vpop.permute.xlu0 %391
        %394 = vset.pattern.permute.xlu0 0
        %395 = vperm.xlu0 %394, %v362
        %v396 = vpop.permute.xlu0 %395
        %398 = vset.pattern.permute.xlu0 0
        %399 = vperm.xlu0 %398, %v364
        %v400 = vpop.permute.xlu0 %399
        %v402 = vlaneseq
        %v403 = vshrl.u32 %v402, 7
        %v404 = vsub.s32 0, %v403
        %v405 = vrot.slane %v339, %v404
        %v406 = vmul.f32 %v372, %v405
        %v407 = vmul.f32 %v376, %v405
        %v408 = vmul.f32 %v380, %v405
        %v409 = vmul.f32 %v384, %v405
        %v410 = vmul.f32 %v388, %v405
        %v411 = vmul.f32 %v392, %v405
        %v412 = vmul.f32 %v396, %v405
        %v413 = vmul.f32 %v400, %v405
        %415 = vset.pattern.permute.xlu0 0
        %416 = vperm.xlu0 %415, %v368
        %v417 = vpop.permute.xlu0 %416
        %v419 = vlaneseq
        %v420 = vshrl.u32 %v419, 7
        %v421 = vsub.s32 1, %v420
        %v422 = vrot.slane %v339, %v421
        %v423 = vmul.f32 %v372, %v422
        %v424 = vmul.f32 %v376, %v422
        %v425 = vmul.f32 %v380, %v422
        %v426 = vmul.f32 %v384, %v422
        %v427 = vmul.f32 %v388, %v422
        %v428 = vmul.f32 %v392, %v422
        %v429 = vmul.f32 %v396, %v422
        %v430 = vmul.f32 %v400, %v422
        %v431 = vmul.f32 %v417, %v422
        %vm441 = vcmask 1046528
        %v442 = vrot.slane %v423, 1
        %v443 = vrot.slane %v424, 1
        %v444 = vsel %vm441, %v442, %v443
        %v445 = vrot.slane %v425, 1
        %v446 = vsel %vm441, %v443, %v445
        %v447 = vrot.slane %v426, 1
        %v448 = vsel %vm441, %v445, %v447
        %v449 = vrot.slane %v427, 1
        %v450 = vsel %vm441, %v447, %v449
        %v451 = vrot.slane %v428, 1
        %v452 = vsel %vm441, %v449, %v451
        %v453 = vrot.slane %v429, 1
        %v454 = vsel %vm441, %v451, %v453
        %v455 = vrot.slane %v430, 1
        %v456 = vsel %vm441, %v453, %v455
        %v457 = vrot.slane %v431, 1
        %v458 = vsel %vm441, %v455, %v457
        %v467 = vadd.f32 %v406, %v444
        %v468 = vadd.f32 %v407, %v446
        %v469 = vadd.f32 %v408, %v448
        %v470 = vadd.f32 %v409, %v450
        %v471 = vadd.f32 %v410, %v452
        %v472 = vadd.f32 %v411, %v454
        %v473 = vadd.f32 %v412, %v456
        %v474 = vadd.f32 %v413, %v458
        %v475 = vlaneseq
        %v476 = vshrl.u32 %v475, 7
        %v477 = vsub.s32 2, %v476
        %v478 = vrot.slane %v339, %v477
        %v479 = vmul.f32 %v372, %v478
        %v480 = vmul.f32 %v376, %v478
        %v481 = vmul.f32 %v380, %v478
        %v482 = vmul.f32 %v384, %v478
        %v483 = vmul.f32 %v388, %v478
        %v484 = vmul.f32 %v392, %v478
        %v485 = vmul.f32 %v396, %v478
        %v486 = vmul.f32 %v400, %v478
        %v487 = vmul.f32 %v417, %v478
        %vm497 = vcmask 1045504
        %v498 = vrot.slane %v479, 2
        %v499 = vrot.slane %v480, 2
        %v500 = vsel %vm497, %v498, %v499
        %v501 = vrot.slane %v481, 2
        %v502 = vsel %vm497, %v499, %v501
        %v503 = vrot.slane %v482, 2
        %v504 = vsel %vm497, %v501, %v503
        %v505 = vrot.slane %v483, 2
        %v506 = vsel %vm497, %v503, %v505
        %v507 = vrot.slane %v484, 2
        %v508 = vsel %vm497, %v505, %v507
        %v509 = vrot.slane %v485, 2
        %v510 = vsel %vm497, %v507, %v509
        %v511 = vrot.slane %v486, 2
        %v512 = vsel %vm497, %v509, %v511
        %v513 = vrot.slane %v487, 2
        %v514 = vsel %vm497, %v511, %v513
        %v523 = vadd.f32 %v467, %v500
        %v524 = vadd.f32 %v468, %v502
        %v525 = vadd.f32 %v469, %v504
        %v526 = vadd.f32 %v470, %v506
        %v527 = vadd.f32 %v471, %v508
        %v528 = vadd.f32 %v472, %v510
        %v529 = vadd.f32 %v473, %v512
        %v530 = vadd.f32 %v474, %v514
        %v531 = vlaneseq
        %v532 = vshrl.u32 %v531, 7
        %v533 = vsub.s32 3, %v532
        %v534 = vrot.slane %v339, %v533
        %v535 = vmul.f32 %v372, %v534
        %v536 = vmul.f32 %v376, %v534
        %v537 = vmul.f32 %v380, %v534
        %v538 = vmul.f32 %v384, %v534
        %v539 = vmul.f32 %v388, %v534
        %v540 = vmul.f32 %v392, %v534
        %v541 = vmul.f32 %v396, %v534
        %v542 = vmul.f32 %v400, %v534
        %v543 = vmul.f32 %v417, %v534
        %vm553 = vcmask 1044480
        %v554 = vrot.slane %v535, 3
        %v555 = vrot.slane %v536, 3
        %v556 = vsel %vm553, %v554, %v555
        %v557 = vrot.slane %v537, 3
        %v558 = vsel %vm553, %v555, %v557
        %v559 = vrot.slane %v538, 3
        %v560 = vsel %vm553, %v557, %v559
        %v561 = vrot.slane %v539, 3
        %v562 = vsel %vm553, %v559, %v561
        %v563 = vrot.slane %v540, 3
        %v564 = vsel %vm553, %v561, %v563
        %v565 = vrot.slane %v541, 3
        %v566 = vsel %vm553, %v563, %v565
        %v567 = vrot.slane %v542, 3
        %v568 = vsel %vm553, %v565, %v567
        %v569 = vrot.slane %v543, 3
        %v570 = vsel %vm553, %v567, %v569
        %v579 = vadd.f32 %v523, %v556
        %v580 = vadd.f32 %v524, %v558
        %v581 = vadd.f32 %v525, %v560
        %v582 = vadd.f32 %v526, %v562
        %v583 = vadd.f32 %v527, %v564
        %v584 = vadd.f32 %v528, %v566
        %v585 = vadd.f32 %v529, %v568
        %v586 = vadd.f32 %v530, %v570
        %v587 = vlaneseq
        %v588 = vshrl.u32 %v587, 7
        %v589 = vsub.s32 4, %v588
        %v590 = vrot.slane %v339, %v589
        %v591 = vmul.f32 %v372, %v590
        %v592 = vmul.f32 %v376, %v590
        %v593 = vmul.f32 %v380, %v590
        %v594 = vmul.f32 %v384, %v590
        %v595 = vmul.f32 %v388, %v590
        %v596 = vmul.f32 %v392, %v590
        %v597 = vmul.f32 %v396, %v590
        %v598 = vmul.f32 %v400, %v590
        %v599 = vmul.f32 %v417, %v590
        %vm609 = vcmask 1043456
        %v610 = vrot.slane %v591, 4
        %v611 = vrot.slane %v592, 4
        %v612 = vsel %vm609, %v610, %v611
        %v613 = vrot.slane %v593, 4
        %v614 = vsel %vm609, %v611, %v613
        %v615 = vrot.slane %v594, 4
        %v616 = vsel %vm609, %v613, %v615
        %v617 = vrot.slane %v595, 4
        %v618 = vsel %vm609, %v615, %v617
        %v619 = vrot.slane %v596, 4
        %v620 = vsel %vm609, %v617, %v619
        %v621 = vrot.slane %v597, 4
        %v622 = vsel %vm609, %v619, %v621
        %v623 = vrot.slane %v598, 4
        %v624 = vsel %vm609, %v621, %v623
        %v625 = vrot.slane %v599, 4
        %v626 = vsel %vm609, %v623, %v625
        %v635 = vadd.f32 %v579, %v612
        %v636 = vadd.f32 %v580, %v614
        %v637 = vadd.f32 %v581, %v616
        %v638 = vadd.f32 %v582, %v618
        %v639 = vadd.f32 %v583, %v620
        %v640 = vadd.f32 %v584, %v622
        %v641 = vadd.f32 %v585, %v624
        %v642 = vadd.f32 %v586, %v626
        %v643 = vlaneseq
        %v644 = vshrl.u32 %v643, 7
        %v645 = vadd.s32 %v644, 8
        %v646 = vadd.s32 %v644, 16
        %v647 = vadd.s32 %v644, 24
        %v648 = vlaneseq
        %v649 = vand.u32 %v648, 127
        %v650 = vmul.u32 %v644, 2
        %v651 = vmul.u32 %v645, 2
        %v652 = vmul.u32 %v646, 2
        %v653 = vmul.u32 %v647, 2
        %vm654 = vcmp.eq.s32.totalorder %v649, %v650
        %vm655 = vcmp.eq.s32.totalorder %v649, %v651
        %vm656 = vcmp.eq.s32.totalorder %v649, %v652
        %vm657 = vcmp.eq.s32.totalorder %v649, %v653
        %v658 = vsel %vm654, 1, 0
        %v659 = vsel %vm655, 1, 0
        %v660 = vsel %vm656, 1, 0
        %v661 = vsel %vm657, 1, 0
        %v662 = vcvt.s32.f32 %v658
        %v663 = vcvt.s32.f32 %v659
        %v664 = vcvt.s32.f32 %v660
        %v665 = vcvt.s32.f32 %v661
        %v667 = vlaneseq
        %v668 = vshrl.u32 %v667, 7
        %v669 = vsub.s32 0, %v668
        %v670 = vrot.slane %v340, %v669
        %vm672 = vcmask 523264
        %v674 = vsel %vm672, %v662, 0
        %v677 = vsel %vm672, %v663, 0
        %v680 = vsel %vm672, %v664, 0
        %v683 = vsel %vm672, %v665, 0
        %685 = vmatprep.subr.mxu0 0.0
        %686 = vmatpush1.msra.mxu0 0.0
        %687 = vmatprep.subr.mxu0 0.0
        %688 = vmatpush1.msra.mxu0 0.0
        %689 = vmatprep.subr.mxu0 0.0
        %690 = vmatpush1.msra.mxu0 0.0
        %691 = vmatprep.subr.mxu0 0.0
        %692 = vmatpush1.msra.mxu0 0.0
        %693 = vmatprep.subr.mxu0 0.0
        %694 = vmatpush1.msra.mxu0 0.0
        %695 = vmatprep.subr.mxu0 0.0
        %696 = vmatpush1.msra.mxu0 0.0
        %697 = vmatprep.subr.mxu0 0.0
        %698 = vmatpush1.msra.mxu0 0.0
        %699 = vmatprep.subr.mxu0 0.0
        %700 = vmatpush1.msra.mxu0 0.0
        %701 = vmatprep.subr.mxu0 0.0
        %702 = vmatpush1.msra.mxu0 %v642
        %703 = vmatprep.subr.mxu0 0.0
        %704 = vmatpush1.msra.mxu0 %v641
        %705 = vmatprep.subr.mxu0 0.0
        %706 = vmatpush1.msra.mxu0 %v640
        %707 = vmatprep.subr.mxu0 0.0
        %708 = vmatpush1.msra.mxu0 %v639
        %709 = vmatprep.subr.mxu0 0.0
        %710 = vmatpush1.msra.mxu0 %v638
        %711 = vmatprep.subr.mxu0 0.0
        %712 = vmatpush1.msra.mxu0 %v637
        %713 = vmatprep.subr.mxu0 0.0
        %714 = vmatpush1.msra.mxu0 %v636
        %715 = vmatprep.subr.mxu0 0.0
        %716 = vmatpush1.msra.mxu0 %v635
        %717 = vmatprep.subr.mxu0 0.0
        %718 = vmatpush2.msra.mxu0 0.0
        %719 = vmatprep.subr.mxu0 0.0
        %720 = vmatpush2.msra.mxu0 0.0
        %721 = vmatprep.subr.mxu0 0.0
        %722 = vmatpush2.msra.mxu0 0.0
        %723 = vmatprep.subr.mxu0 0.0
        %724 = vmatpush2.msra.mxu0 0.0
        %725 = vmatprep.subr.mxu0 0.0
        %726 = vmatpush2.msra.mxu0 0.0
        %727 = vmatprep.subr.mxu0 0.0
        %728 = vmatpush2.msra.mxu0 0.0
        %729 = vmatprep.subr.mxu0 0.0
        %730 = vmatpush2.msra.mxu0 0.0
        %731 = vmatprep.subr.mxu0 0.0
        %732 = vmatpush2.msra.mxu0 0.0
        %733 = vmatprep.subr.mxu0 0.0
        %734 = vmatpush2.msra.mxu0 0.0
        %735 = vmatprep.subr.mxu0 0.0
        %736 = vmatpush2.msra.mxu0 0.0
        %737 = vmatprep.subr.mxu0 0.0
        %738 = vmatpush2.msra.mxu0 0.0
        %739 = vmatprep.subr.mxu0 0.0
        %740 = vmatpush2.msra.mxu0 0.0
        %741 = vmatprep.subr.mxu0 0.0
        %742 = vmatpush2.msra.mxu0 0.0
        %743 = vmatprep.subr.mxu0 0.0
        %744 = vmatpush2.msra.mxu0 0.0
        %745 = vmatprep.subr.mxu0 0.0
        %746 = vmatpush2.msra.mxu0 0.0
        %747 = vmatprep.subr.mxu0 0.0
        %748 = vmatpush2.msra.mxu0 0.0
        %749 = vmatprep.mubr.f32.mxu0 0.0
        %750 = vmatmul.mubr.f32.gmra.mxu0 %v674
        %v751 = vpop.f32.mrf.mxu0
        %v752 = vadd.f32 %v670, %v751
        %v753 = vpop.f32.mrf.mxu0
        %754 = vmatprep.mubr.f32.mxu0 0.0
        %755 = vmatmul.mubr.f32.gmra.mxu0 %v677
        %v756 = vpop.f32.mrf.mxu0
        %v757 = vadd.f32 %v670, %v756
        %v758 = vpop.f32.mrf.mxu0
        %759 = vmatprep.mubr.f32.mxu0 0.0
        %760 = vmatmul.mubr.f32.gmra.mxu0 %v680
        %v761 = vpop.f32.mrf.mxu0
        %v762 = vadd.f32 %v670, %v761
        %v763 = vpop.f32.mrf.mxu0
        %764 = vmatprep.mubr.f32.mxu0 0.0
        %765 = vmatmul.mubr.f32.gmra.mxu0 %v683
        %v766 = vpop.f32.mrf.mxu0
        %v767 = vadd.f32 %v670, %v766
        %v768 = vpop.f32.mrf.mxu0
        %769 = vdwg.mxu0
        %v770 = vmax.f32 %v752, 0.0
        %v771 = vmax.f32 %v757, 0.0
        %v772 = vmax.f32 %v762, 0.0
        %v773 = vmax.f32 %v767, 0.0
        %v774 = vand.u32 2147483647, %v752
        %v775 = vand.u32 2147483647, %v757
        %v776 = vand.u32 2147483647, %v762
        %v777 = vand.u32 2147483647, %v767
        %v778 = vsub.f32 0.0, %v774
        %v779 = vsub.f32 0.0, %v775
        %v780 = vsub.f32 0.0, %v776
        %v781 = vsub.f32 0.0, %v777
        %v782 = vmul.f32 %v778, 1.442695
        %v783 = vpow.pop %v782
        %v784 = vmul.f32 %v779, 1.442695
        %v785 = vpow.pop %v784
        %v786 = vmul.f32 %v780, 1.442695
        %v787 = vpow.pop %v786
        %v788 = vmul.f32 %v781, 1.442695
        %v789 = vpow.pop %v788
        %v790 = vadd.f32 %v783, 1.0
        %v791 = vlog2.pop %v790
        %v792 = vmul.f32 %v791, 0.6931472
        %v793 = vmul.f32 -0.5, %v783
        %v794 = vadd.f32 %v793, 1.0
        %v795 = vmul.f32 %v794, %v783
        %v796 = vand.u32 2147483647, %v783
        %vm797 = vcmp.lt.f32.partialorder %v796, 0.0004427343
        %v798 = vsel %vm797, %v795, %v792
        %v799 = vadd.f32 %v785, 1.0
        %v800 = vlog2.pop %v799
        %v801 = vmul.f32 %v800, 0.6931472
        %v802 = vmul.f32 -0.5, %v785
        %v803 = vadd.f32 %v802, 1.0
        %v804 = vmul.f32 %v803, %v785
        %v805 = vand.u32 2147483647, %v785
        %vm806 = vcmp.lt.f32.partialorder %v805, 0.0004427343
        %v807 = vsel %vm806, %v804, %v801
        %v808 = vadd.f32 %v787, 1.0
        %v809 = vlog2.pop %v808
        %v810 = vmul.f32 %v809, 0.6931472
        %v811 = vmul.f32 -0.5, %v787
        %v812 = vadd.f32 %v811, 1.0
        %v813 = vmul.f32 %v812, %v787
        %v814 = vand.u32 2147483647, %v787
        %vm815 = vcmp.lt.f32.partialorder %v814, 0.0004427343
        %v816 = vsel %vm815, %v813, %v810
        %v817 = vadd.f32 %v789, 1.0
        %v818 = vlog2.pop %v817
        %v819 = vmul.f32 %v818, 0.6931472
        %v820 = vmul.f32 -0.5, %v789
        %v821 = vadd.f32 %v820, 1.0
        %v822 = vmul.f32 %v821, %v789
        %v823 = vand.u32 2147483647, %v789
        %vm824 = vcmp.lt.f32.partialorder %v823, 0.0004427343
        %v825 = vsel %vm824, %v822, %v819
        %v826 = vadd.f32 %v770, %v798
        %v827 = vadd.f32 %v771, %v807
        %v828 = vadd.f32 %v772, %v816
        %v829 = vadd.f32 %v773, %v825
        %v830 = vtanh.pop %v826
        %v831 = vtanh.pop %v827
        %v832 = vtanh.pop %v828
        %v833 = vtanh.pop %v829
        %v834 = vmul.f32 %v752, %v830
        %v835 = vmul.f32 %v757, %v831
        %v836 = vmul.f32 %v762, %v832
        %v837 = vmul.f32 %v767, %v833
        %v838 = vld [vmem:[%s3] sm:$0xff]
        %v839 = vld [vmem:[%s3 + $0x8] sm:$0xff]
        %v840 = vld [vmem:[%s3 + $0x10] sm:$0xff]
        %v841 = vld [vmem:[%s3 + $0x18] sm:$0xff]
        %v842 = vld [vmem:[%s3 + $0x20] sm:$0xff]
        %v843 = vld [vmem:[%s4] sm:$0x1]
        %v848 = vrot.slane %v834, 6
        %v849 = vrot.slane %v835, 6
        %v850 = vsel %vm349, %v848, %v849
        %v851 = vrot.slane %v836, 6
        %v852 = vsel %vm349, %v849, %v851
        %v853 = vrot.slane %v837, 6
        %v854 = vsel %vm349, %v851, %v853
        %v857 = vsel %vm349, 0.0, %v848
        %v858 = vsel %vm349, %v853, 0.0
        %v861 = vrot.slane %v857, 1
        %v862 = vrot.slane %v850, 1
        %v863 = vsel %vm441, %v861, %v862
        %v864 = vrot.slane %v852, 1
        %v865 = vsel %vm441, %v862, %v864
        %v866 = vrot.slane %v854, 1
        %v867 = vsel %vm441, %v864, %v866
        %v868 = vrot.slane %v858, 1
        %v869 = vsel %vm441, %v866, %v868
        %vm870 = vcmask 64512
        %v871 = vsel %vm870, %v863, 0
        %v873 = vsel %vm870, %v865, 0
        %v875 = vsel %vm870, %v867, 0
        %v877 = vsel %vm870, %v869, 0
        %879 = vmatprep.subr.mxu0 0.0
        %880 = vmatpush1.msra.mxu0 0.0
        %881 = vmatprep.subr.mxu0 0.0
        %882 = vmatpush1.msra.mxu0 0.0
        %883 = vmatprep.subr.mxu0 0.0
        %884 = vmatpush1.msra.mxu0 0.0
        %885 = vmatprep.subr.mxu0 0.0
        %886 = vmatpush1.msra.mxu0 0.0
        %887 = vmatprep.subr.mxu0 0.0
        %888 = vmatpush1.msra.mxu0 0.0
        %889 = vmatprep.subr.mxu0 0.0
        %890 = vmatpush1.msra.mxu0 0.0
        %891 = vmatprep.subr.mxu0 0.0
        %892 = vmatpush1.msra.mxu0 0.0
        %893 = vmatprep.subr.mxu0 0.0
        %894 = vmatpush1.msra.mxu0 0.0
        %895 = vmatprep.subr.mxu0 0.0
        %896 = vmatpush1.msra.mxu0 0.0
        %897 = vmatprep.subr.mxu0 0.0
        %898 = vmatpush1.msra.mxu0 0.0
        %899 = vmatprep.subr.mxu0 0.0
        %900 = vmatpush1.msra.mxu0 0.0
        %901 = vmatprep.subr.mxu0 0.0
        %902 = vmatpush1.msra.mxu0 0.0
        %903 = vmatprep.subr.mxu0 0.0
        %904 = vmatpush1.msra.mxu0 0.0
        %905 = vmatprep.subr.mxu0 0.0
        %906 = vmatpush1.msra.mxu0 0.0
        %907 = vmatprep.subr.mxu0 0.0
        %908 = vmatpush1.msra.mxu0 0.0
        %909 = vmatprep.subr.mxu0 0.0
        %910 = vmatpush1.msra.mxu0 %v839
        %911 = vmatprep.subr.mxu0 0.0
        %912 = vmatpush2.msra.mxu0 0.0
        %913 = vmatprep.subr.mxu0 0.0
        %914 = vmatpush2.msra.mxu0 0.0
        %915 = vmatprep.subr.mxu0 0.0
        %916 = vmatpush2.msra.mxu0 0.0
        %917 = vmatprep.subr.mxu0 0.0
        %918 = vmatpush2.msra.mxu0 0.0
        %919 = vmatprep.subr.mxu0 0.0
        %920 = vmatpush2.msra.mxu0 0.0
        %921 = vmatprep.subr.mxu0 0.0
        %922 = vmatpush2.msra.mxu0 0.0
        %923 = vmatprep.subr.mxu0 0.0
        %924 = vmatpush2.msra.mxu0 0.0
        %925 = vmatprep.subr.mxu0 0.0
        %926 = vmatpush2.msra.mxu0 0.0
        %927 = vmatprep.subr.mxu0 0.0
        %928 = vmatpush2.msra.mxu0 0.0
        %929 = vmatprep.subr.mxu0 0.0
        %930 = vmatpush2.msra.mxu0 0.0
        %931 = vmatprep.subr.mxu0 0.0
        %932 = vmatpush2.msra.mxu0 0.0
        %933 = vmatprep.subr.mxu0 0.0
        %934 = vmatpush2.msra.mxu0 0.0
        %935 = vmatprep.subr.mxu0 0.0
        %936 = vmatpush2.msra.mxu0 0.0
        %937 = vmatprep.subr.mxu0 0.0
        %938 = vmatpush2.msra.mxu0 0.0
        %939 = vmatprep.subr.mxu0 0.0
        %940 = vmatpush2.msra.mxu0 0.0
        %941 = vmatprep.subr.mxu0 0.0
        %942 = vmatpush2.msra.mxu0 0.0
        %943 = vmatprep.mubr.f32.mxu0 0.0
        %944 = vmatmul.mubr.f32.gmra.mxu0 %v871
        %v945 = vpop.f32.mrf.mxu0
        %v946 = vadd.f32 0.0, %v945
        %v947 = vpop.f32.mrf.mxu0
        %948 = vmatprep.mubr.f32.mxu0 0.0
        %949 = vmatmul.mubr.f32.gmra.mxu0 %v873
        %v950 = vpop.f32.mrf.mxu0
        %v951 = vadd.f32 0.0, %v950
        %v952 = vpop.f32.mrf.mxu0
        %953 = vmatprep.mubr.f32.mxu0 0.0
        %954 = vmatmul.mubr.f32.gmra.mxu0 %v875
        %v955 = vpop.f32.mrf.mxu0
        %v956 = vadd.f32 0.0, %v955
        %v957 = vpop.f32.mrf.mxu0
        %958 = vmatprep.mubr.f32.mxu0 0.0
        %959 = vmatmul.mubr.f32.gmra.mxu0 %v877
        %v960 = vpop.f32.mrf.mxu0
        %v961 = vadd.f32 0.0, %v960
        %v962 = vpop.f32.mrf.mxu0
        %963 = vdwg.mxu0
        %v964 = vsel %vm870, %v857, 0
        %v966 = vsel %vm870, %v850, 0
        %v968 = vsel %vm870, %v852, 0
        %v970 = vsel %vm870, %v854, 0
        %972 = vmatprep.subr.mxu0 0.0
        %973 = vmatpush1.msra.mxu0 0.0
        %974 = vmatprep.subr.mxu0 0.0
        %975 = vmatpush1.msra.mxu0 0.0
        %976 = vmatprep.subr.mxu0 0.0
        %977 = vmatpush1.msra.mxu0 0.0
        %978 = vmatprep.subr.mxu0 0.0
        %979 = vmatpush1.msra.mxu0 0.0
        %980 = vmatprep.subr.mxu0 0.0
        %981 = vmatpush1.msra.mxu0 0.0
        %982 = vmatprep.subr.mxu0 0.0
        %983 = vmatpush1.msra.mxu0 0.0
        %984 = vmatprep.subr.mxu0 0.0
        %985 = vmatpush1.msra.mxu0 0.0
        %986 = vmatprep.subr.mxu0 0.0
        %987 = vmatpush1.msra.mxu0 0.0
        %988 = vmatprep.subr.mxu0 0.0
        %989 = vmatpush1.msra.mxu0 0.0
        %990 = vmatprep.subr.mxu0 0.0
        %991 = vmatpush1.msra.mxu0 0.0
        %992 = vmatprep.subr.mxu0 0.0
        %993 = vmatpush1.msra.mxu0 0.0
        %994 = vmatprep.subr.mxu0 0.0
        %995 = vmatpush1.msra.mxu0 0.0
        %996 = vmatprep.subr.mxu0 0.0
        %997 = vmatpush1.msra.mxu0 0.0
        %998 = vmatprep.subr.mxu0 0.0
        %999 = vmatpush1.msra.mxu0 0.0
        %1000 = vmatprep.subr.mxu0 0.0
        %1001 = vmatpush1.msra.mxu0 0.0
        %1002 = vmatprep.subr.mxu0 0.0
        %1003 = vmatpush1.msra.mxu0 %v838
        %1004 = vmatprep.subr.mxu0 0.0
        %1005 = vmatpush2.msra.mxu0 0.0
        %1006 = vmatprep.subr.mxu0 0.0
        %1007 = vmatpush2.msra.mxu0 0.0
        %1008 = vmatprep.subr.mxu0 0.0
        %1009 = vmatpush2.msra.mxu0 0.0
        %1010 = vmatprep.subr.mxu0 0.0
        %1011 = vmatpush2.msra.mxu0 0.0
        %1012 = vmatprep.subr.mxu0 0.0
        %1013 = vmatpush2.msra.mxu0 0.0
        %1014 = vmatprep.subr.mxu0 0.0
        %1015 = vmatpush2.msra.mxu0 0.0
        %1016 = vmatprep.subr.mxu0 0.0
        %1017 = vmatpush2.msra.mxu0 0.0
        %1018 = vmatprep.subr.mxu0 0.0
        %1019 = vmatpush2.msra.mxu0 0.0
        %1020 = vmatprep.subr.mxu0 0.0
        %1021 = vmatpush2.msra.mxu0 0.0
        %1022 = vmatprep.subr.mxu0 0.0
        %1023 = vmatpush2.msra.mxu0 0.0
        %1024 = vmatprep.subr.mxu0 0.0
        %1025 = vmatpush2.msra.mxu0 0.0
        %1026 = vmatprep.subr.mxu0 0.0
        %1027 = vmatpush2.msra.mxu0 0.0
        %1028 = vmatprep.subr.mxu0 0.0
        %1029 = vmatpush2.msra.mxu0 0.0
        %1030 = vmatprep.subr.mxu0 0.0
        %1031 = vmatpush2.msra.mxu0 0.0
        %1032 = vmatprep.subr.mxu0 0.0
        %1033 = vmatpush2.msra.mxu0 0.0
        %1034 = vmatprep.subr.mxu0 0.0
        %1035 = vmatpush2.msra.mxu0 0.0
        %1036 = vmatprep.mubr.f32.mxu0 0.0
        %1037 = vmatmul.mubr.f32.gmra.mxu0 %v964
        %v1038 = vpop.f32.mrf.mxu0
        %v1039 = vadd.f32 %v946, %v1038
        %v1040 = vpop.f32.mrf.mxu0
        %1041 = vmatprep.mubr.f32.mxu0 0.0
        %1042 = vmatmul.mubr.f32.gmra.mxu0 %v966
        %v1043 = vpop.f32.mrf.mxu0
        %v1044 = vadd.f32 %v951, %v1043
        %v1045 = vpop.f32.mrf.mxu0
        %1046 = vmatprep.mubr.f32.mxu0 0.0
        %1047 = vmatmul.mubr.f32.gmra.mxu0 %v968
        %v1048 = vpop.f32.mrf.mxu0
        %v1049 = vadd.f32 %v956, %v1048
        %v1050 = vpop.f32.mrf.mxu0
        %1051 = vmatprep.mubr.f32.mxu0 0.0
        %1052 = vmatmul.mubr.f32.gmra.mxu0 %v970
        %v1053 = vpop.f32.mrf.mxu0
        %v1054 = vadd.f32 %v961, %v1053
        %v1055 = vpop.f32.mrf.mxu0
        %1056 = vdwg.mxu0
        %v1057 = vrot.slane %v857, 2
        %v1058 = vrot.slane %v850, 2
        %v1059 = vsel %vm497, %v1057, %v1058
        %v1060 = vrot.slane %v852, 2
        %v1061 = vsel %vm497, %v1058, %v1060
        %v1062 = vrot.slane %v854, 2
        %v1063 = vsel %vm497, %v1060, %v1062
        %v1064 = vrot.slane %v858, 2
        %v1065 = vsel %vm497, %v1062, %v1064
        %v1066 = vsel %vm870, %v1059, 0
        %v1068 = vsel %vm870, %v1061, 0
        %v1070 = vsel %vm870, %v1063, 0
        %v1072 = vsel %vm870, %v1065, 0
        %1074 = vmatprep.subr.mxu0 0.0
        %1075 = vmatpush1.msra.mxu0 0.0
        %1076 = vmatprep.subr.mxu0 0.0
        %1077 = vmatpush1.msra.mxu0 0.0
        %1078 = vmatprep.subr.mxu0 0.0
        %1079 = vmatpush1.msra.mxu0 0.0
        %1080 = vmatprep.subr.mxu0 0.0
        %1081 = vmatpush1.msra.mxu0 0.0
        %1082 = vmatprep.subr.mxu0 0.0
        %1083 = vmatpush1.msra.mxu0 0.0
        %1084 = vmatprep.subr.mxu0 0.0
        %1085 = vmatpush1.msra.mxu0 0.0
        %1086 = vmatprep.subr.mxu0 0.0
        %1087 = vmatpush1.msra.mxu0 0.0
        %1088 = vmatprep.subr.mxu0 0.0
        %1089 = vmatpush1.msra.mxu0 0.0
        %1090 = vmatprep.subr.mxu0 0.0
        %1091 = vmatpush1.msra.mxu0 0.0
        %1092 = vmatprep.subr.mxu0 0.0
        %1093 = vmatpush1.msra.mxu0 0.0
        %1094 = vmatprep.subr.mxu0 0.0
        %1095 = vmatpush1.msra.mxu0 0.0
        %1096 = vmatprep.subr.mxu0 0.0
        %1097 = vmatpush1.msra.mxu0 0.0
        %1098 = vmatprep.subr.mxu0 0.0
        %1099 = vmatpush1.msra.mxu0 0.0
        %1100 = vmatprep.subr.mxu0 0.0
        %1101 = vmatpush1.msra.mxu0 0.0
        %1102 = vmatprep.subr.mxu0 0.0
        %1103 = vmatpush1.msra.mxu0 0.0
        %1104 = vmatprep.subr.mxu0 0.0
        %1105 = vmatpush1.msra.mxu0 %v840
        %1106 = vmatprep.subr.mxu0 0.0
        %1107 = vmatpush2.msra.mxu0 0.0
        %1108 = vmatprep.subr.mxu0 0.0
        %1109 = vmatpush2.msra.mxu0 0.0
        %1110 = vmatprep.subr.mxu0 0.0
        %1111 = vmatpush2.msra.mxu0 0.0
        %1112 = vmatprep.subr.mxu0 0.0
        %1113 = vmatpush2.msra.mxu0 0.0
        %1114 = vmatprep.subr.mxu0 0.0
        %1115 = vmatpush2.msra.mxu0 0.0
        %1116 = vmatprep.subr.mxu0 0.0
        %1117 = vmatpush2.msra.mxu0 0.0
        %1118 = vmatprep.subr.mxu0 0.0
        %1119 = vmatpush2.msra.mxu0 0.0
        %1120 = vmatprep.subr.mxu0 0.0
        %1121 = vmatpush2.msra.mxu0 0.0
        %1122 = vmatprep.subr.mxu0 0.0
        %1123 = vmatpush2.msra.mxu0 0.0
        %1124 = vmatprep.subr.mxu0 0.0
        %1125 = vmatpush2.msra.mxu0 0.0
        %1126 = vmatprep.subr.mxu0 0.0
        %1127 = vmatpush2.msra.mxu0 0.0
        %1128 = vmatprep.subr.mxu0 0.0
        %1129 = vmatpush2.msra.mxu0 0.0
        %1130 = vmatprep.subr.mxu0 0.0
        %1131 = vmatpush2.msra.mxu0 0.0
        %1132 = vmatprep.subr.mxu0 0.0
        %1133 = vmatpush2.msra.mxu0 0.0
        %1134 = vmatprep.subr.mxu0 0.0
        %1135 = vmatpush2.msra.mxu0 0.0
        %1136 = vmatprep.subr.mxu0 0.0
        %1137 = vmatpush2.msra.mxu0 0.0
        %1138 = vmatprep.mubr.f32.mxu0 0.0
        %1139 = vmatmul.mubr.f32.gmra.mxu0 %v1066
        %v1140 = vpop.f32.mrf.mxu0
        %v1141 = vadd.f32 0.0, %v1140
        %v1142 = vpop.f32.mrf.mxu0
        %1143 = vmatprep.mubr.f32.mxu0 0.0
        %1144 = vmatmul.mubr.f32.gmra.mxu0 %v1068
        %v1145 = vpop.f32.mrf.mxu0
        %v1146 = vadd.f32 0.0, %v1145
        %v1147 = vpop.f32.mrf.mxu0
        %1148 = vmatprep.mubr.f32.mxu0 0.0
        %1149 = vmatmul.mubr.f32.gmra.mxu0 %v1070
        %v1150 = vpop.f32.mrf.mxu0
        %v1151 = vadd.f32 0.0, %v1150
        %v1152 = vpop.f32.mrf.mxu0
        %1153 = vmatprep.mubr.f32.mxu0 0.0
        %1154 = vmatmul.mubr.f32.gmra.mxu0 %v1072
        %v1155 = vpop.f32.mrf.mxu0
        %v1156 = vadd.f32 0.0, %v1155
        %v1157 = vpop.f32.mrf.mxu0
        %1158 = vdwg.mxu0
        %v1159 = vadd.f32 %v1039, %v1141
        %v1160 = vadd.f32 %v1044, %v1146
        %v1161 = vadd.f32 %v1049, %v1151
        %v1162 = vadd.f32 %v1054, %v1156
        %v1163 = vrot.slane %v857, 3
        %v1164 = vrot.slane %v850, 3
        %v1165 = vsel %vm553, %v1163, %v1164
        %v1166 = vrot.slane %v852, 3
        %v1167 = vsel %vm553, %v1164, %v1166
        %v1168 = vrot.slane %v854, 3
        %v1169 = vsel %vm553, %v1166, %v1168
        %v1170 = vrot.slane %v858, 3
        %v1171 = vsel %vm553, %v1168, %v1170
        %v1172 = vsel %vm870, %v1165, 0
        %v1174 = vsel %vm870, %v1167, 0
        %v1176 = vsel %vm870, %v1169, 0
        %v1178 = vsel %vm870, %v1171, 0
        %1180 = vmatprep.subr.mxu0 0.0
        %1181 = vmatpush1.msra.mxu0 0.0
        %1182 = vmatprep.subr.mxu0 0.0
        %1183 = vmatpush1.msra.mxu0 0.0
        %1184 = vmatprep.subr.mxu0 0.0
        %1185 = vmatpush1.msra.mxu0 0.0
        %1186 = vmatprep.subr.mxu0 0.0
        %1187 = vmatpush1.msra.mxu0 0.0
        %1188 = vmatprep.subr.mxu0 0.0
        %1189 = vmatpush1.msra.mxu0 0.0
        %1190 = vmatprep.subr.mxu0 0.0
        %1191 = vmatpush1.msra.mxu0 0.0
        %1192 = vmatprep.subr.mxu0 0.0
        %1193 = vmatpush1.msra.mxu0 0.0
        %1194 = vmatprep.subr.mxu0 0.0
        %1195 = vmatpush1.msra.mxu0 0.0
        %1196 = vmatprep.subr.mxu0 0.0
        %1197 = vmatpush1.msra.mxu0 0.0
        %1198 = vmatprep.subr.mxu0 0.0
        %1199 = vmatpush1.msra.mxu0 0.0
        %1200 = vmatprep.subr.mxu0 0.0
        %1201 = vmatpush1.msra.mxu0 0.0
        %1202 = vmatprep.subr.mxu0 0.0
        %1203 = vmatpush1.msra.mxu0 0.0
        %1204 = vmatprep.subr.mxu0 0.0
        %1205 = vmatpush1.msra.mxu0 0.0
        %1206 = vmatprep.subr.mxu0 0.0
        %1207 = vmatpush1.msra.mxu0 0.0
        %1208 = vmatprep.subr.mxu0 0.0
        %1209 = vmatpush1.msra.mxu0 0.0
        %1210 = vmatprep.subr.mxu0 0.0
        %1211 = vmatpush1.msra.mxu0 %v841
        %1212 = vmatprep.subr.mxu0 0.0
        %1213 = vmatpush2.msra.mxu0 0.0
        %1214 = vmatprep.subr.mxu0 0.0
        %1215 = vmatpush2.msra.mxu0 0.0
        %1216 = vmatprep.subr.mxu0 0.0
        %1217 = vmatpush2.msra.mxu0 0.0
        %1218 = vmatprep.subr.mxu0 0.0
        %1219 = vmatpush2.msra.mxu0 0.0
        %1220 = vmatprep.subr.mxu0 0.0
        %1221 = vmatpush2.msra.mxu0 0.0
        %1222 = vmatprep.subr.mxu0 0.0
        %1223 = vmatpush2.msra.mxu0 0.0
        %1224 = vmatprep.subr.mxu0 0.0
        %1225 = vmatpush2.msra.mxu0 0.0
        %1226 = vmatprep.subr.mxu0 0.0
        %1227 = vmatpush2.msra.mxu0 0.0
        %1228 = vmatprep.subr.mxu0 0.0
        %1229 = vmatpush2.msra.mxu0 0.0
        %1230 = vmatprep.subr.mxu0 0.0
        %1231 = vmatpush2.msra.mxu0 0.0
        %1232 = vmatprep.subr.mxu0 0.0
        %1233 = vmatpush2.msra.mxu0 0.0
        %1234 = vmatprep.subr.mxu0 0.0
        %1235 = vmatpush2.msra.mxu0 0.0
        %1236 = vmatprep.subr.mxu0 0.0
        %1237 = vmatpush2.msra.mxu0 0.0
        %1238 = vmatprep.subr.mxu0 0.0
        %1239 = vmatpush2.msra.mxu0 0.0
        %1240 = vmatprep.subr.mxu0 0.0
        %1241 = vmatpush2.msra.mxu0 0.0
        %1242 = vmatprep.subr.mxu0 0.0
        %1243 = vmatpush2.msra.mxu0 0.0
        %1244 = vmatprep.mubr.f32.mxu0 0.0
        %1245 = vmatmul.mubr.f32.gmra.mxu0 %v1172
        %v1246 = vpop.f32.mrf.mxu0
        %v1247 = vadd.f32 0.0, %v1246
        %v1248 = vpop.f32.mrf.mxu0
        %1249 = vmatprep.mubr.f32.mxu0 0.0
        %1250 = vmatmul.mubr.f32.gmra.mxu0 %v1174
        %v1251 = vpop.f32.mrf.mxu0
        %v1252 = vadd.f32 0.0, %v1251
        %v1253 = vpop.f32.mrf.mxu0
        %1254 = vmatprep.mubr.f32.mxu0 0.0
        %1255 = vmatmul.mubr.f32.gmra.mxu0 %v1176
        %v1256 = vpop.f32.mrf.mxu0
        %v1257 = vadd.f32 0.0, %v1256
        %v1258 = vpop.f32.mrf.mxu0
        %1259 = vmatprep.mubr.f32.mxu0 0.0
        %1260 = vmatmul.mubr.f32.gmra.mxu0 %v1178
        %v1261 = vpop.f32.mrf.mxu0
        %v1262 = vadd.f32 0.0, %v1261
        %v1263 = vpop.f32.mrf.mxu0
        %1264 = vdwg.mxu0
        %v1265 = vadd.f32 %v1159, %v1247
        %v1266 = vadd.f32 %v1160, %v1252
        %v1267 = vadd.f32 %v1161, %v1257
        %v1268 = vadd.f32 %v1162, %v1262
        %v1269 = vrot.slane %v857, 4
        %v1270 = vrot.slane %v850, 4
        %v1271 = vsel %vm609, %v1269, %v1270
        %v1272 = vrot.slane %v852, 4
        %v1273 = vsel %vm609, %v1270, %v1272
        %v1274 = vrot.slane %v854, 4
        %v1275 = vsel %vm609, %v1272, %v1274
        %v1276 = vrot.slane %v858, 4
        %v1277 = vsel %vm609, %v1274, %v1276
        %v1278 = vsel %vm870, %v1271, 0
        %v1280 = vsel %vm870, %v1273, 0
        %v1282 = vsel %vm870, %v1275, 0
        %v1284 = vsel %vm870, %v1277, 0
        %1286 = vmatprep.subr.mxu0 0.0
        %1287 = vmatpush1.msra.mxu0 0.0
        %1288 = vmatprep.subr.mxu0 0.0
        %1289 = vmatpush1.msra.mxu0 0.0
        %1290 = vmatprep.subr.mxu0 0.0
        %1291 = vmatpush1.msra.mxu0 0.0
        %1292 = vmatprep.subr.mxu0 0.0
        %1293 = vmatpush1.msra.mxu0 0.0
        %1294 = vmatprep.subr.mxu0 0.0
        %1295 = vmatpush1.msra.mxu0 0.0
        %1296 = vmatprep.subr.mxu0 0.0
        %1297 = vmatpush1.msra.mxu0 0.0
        %1298 = vmatprep.subr.mxu0 0.0
        %1299 = vmatpush1.msra.mxu0 0.0
        %1300 = vmatprep.subr.mxu0 0.0
        %1301 = vmatpush1.msra.mxu0 0.0
        %1302 = vmatprep.subr.mxu0 0.0
        %1303 = vmatpush1.msra.mxu0 0.0
        %1304 = vmatprep.subr.mxu0 0.0
        %1305 = vmatpush1.msra.mxu0 0.0
        %1306 = vmatprep.subr.mxu0 0.0
        %1307 = vmatpush1.msra.mxu0 0.0
        %1308 = vmatprep.subr.mxu0 0.0
        %1309 = vmatpush1.msra.mxu0 0.0
        %1310 = vmatprep.subr.mxu0 0.0
        %1311 = vmatpush1.msra.mxu0 0.0
        %1312 = vmatprep.subr.mxu0 0.0
        %1313 = vmatpush1.msra.mxu0 0.0
        %1314 = vmatprep.subr.mxu0 0.0
        %1315 = vmatpush1.msra.mxu0 0.0
        %1316 = vmatprep.subr.mxu0 0.0
        %1317 = vmatpush1.msra.mxu0 %v842
        %1318 = vmatprep.subr.mxu0 0.0
        %1319 = vmatpush2.msra.mxu0 0.0
        %1320 = vmatprep.subr.mxu0 0.0
        %1321 = vmatpush2.msra.mxu0 0.0
        %1322 = vmatprep.subr.mxu0 0.0
        %1323 = vmatpush2.msra.mxu0 0.0
        %1324 = vmatprep.subr.mxu0 0.0
        %1325 = vmatpush2.msra.mxu0 0.0
        %1326 = vmatprep.subr.mxu0 0.0
        %1327 = vmatpush2.msra.mxu0 0.0
        %1328 = vmatprep.subr.mxu0 0.0
        %1329 = vmatpush2.msra.mxu0 0.0
        %1330 = vmatprep.subr.mxu0 0.0
        %1331 = vmatpush2.msra.mxu0 0.0
        %1332 = vmatprep.subr.mxu0 0.0
        %1333 = vmatpush2.msra.mxu0 0.0
        %1334 = vmatprep.subr.mxu0 0.0
        %1335 = vmatpush2.msra.mxu0 0.0
        %1336 = vmatprep.subr.mxu0 0.0
        %1337 = vmatpush2.msra.mxu0 0.0
        %1338 = vmatprep.subr.mxu0 0.0
        %1339 = vmatpush2.msra.mxu0 0.0
        %1340 = vmatprep.subr.mxu0 0.0
        %1341 = vmatpush2.msra.mxu0 0.0
        %1342 = vmatprep.subr.mxu0 0.0
        %1343 = vmatpush2.msra.mxu0 0.0
        %1344 = vmatprep.subr.mxu0 0.0
        %1345 = vmatpush2.msra.mxu0 0.0
        %1346 = vmatprep.subr.mxu0 0.0
        %1347 = vmatpush2.msra.mxu0 0.0
        %1348 = vmatprep.subr.mxu0 0.0
        %1349 = vmatpush2.msra.mxu0 0.0
        %1350 = vmatprep.mubr.f32.mxu0 0.0
        %1351 = vmatmul.mubr.f32.gmra.mxu0 %v1278
        %v1352 = vpop.f32.mrf.mxu0
        %v1353 = vadd.f32 0.0, %v1352
        %v1354 = vpop.f32.mrf.mxu0
        %1355 = vmatprep.mubr.f32.mxu0 0.0
        %1356 = vmatmul.mubr.f32.gmra.mxu0 %v1280
        %v1357 = vpop.f32.mrf.mxu0
        %v1358 = vadd.f32 0.0, %v1357
        %v1359 = vpop.f32.mrf.mxu0
        %1360 = vmatprep.mubr.f32.mxu0 0.0
        %1361 = vmatmul.mubr.f32.gmra.mxu0 %v1282
        %v1362 = vpop.f32.mrf.mxu0
        %v1363 = vadd.f32 0.0, %v1362
        %v1364 = vpop.f32.mrf.mxu0
        %1365 = vmatprep.mubr.f32.mxu0 0.0
        %1366 = vmatmul.mubr.f32.gmra.mxu0 %v1284
        %v1367 = vpop.f32.mrf.mxu0
        %v1368 = vadd.f32 0.0, %v1367
        %v1369 = vpop.f32.mrf.mxu0
        %1370 = vdwg.mxu0
        %v1371 = vadd.f32 %v1265, %v1353
        %v1372 = vadd.f32 %v1266, %v1358
        %v1373 = vadd.f32 %v1267, %v1363
        %v1374 = vadd.f32 %v1268, %v1368
        %v1376 = vlaneseq
        %v1377 = vshrl.u32 %v1376, 7
        %v1378 = vsub.s32 0, %v1377
        %v1379 = vrot.slane %v843, %v1378
        %vm1381 = vcmask 261120
        %v1382 = vsel %vm1381, %v662, 0
        %v1384 = vsel %vm1381, %v663, 0
        %1386 = vmatprep.subr.mxu0 0.0
        %1387 = vmatpush1.msra.mxu0 0.0
        %1388 = vmatprep.subr.mxu0 0.0
        %1389 = vmatpush1.msra.mxu0 0.0
        %1390 = vmatprep.subr.mxu0 0.0
        %1391 = vmatpush1.msra.mxu0 0.0
        %1392 = vmatprep.subr.mxu0 0.0
        %1393 = vmatpush1.msra.mxu0 0.0
        %1394 = vmatprep.subr.mxu0 0.0
        %1395 = vmatpush1.msra.mxu0 0.0
        %1396 = vmatprep.subr.mxu0 0.0
        %1397 = vmatpush1.msra.mxu0 0.0
        %1398 = vmatprep.subr.mxu0 0.0
        %1399 = vmatpush1.msra.mxu0 0.0
        %1400 = vmatprep.subr.mxu0 0.0
        %1401 = vmatpush1.msra.mxu0 0.0
        %1402 = vmatprep.subr.mxu0 0.0
        %1403 = vmatpush1.msra.mxu0 0.0
        %1404 = vmatprep.subr.mxu0 0.0
        %1405 = vmatpush1.msra.mxu0 0.0
        %1406 = vmatprep.subr.mxu0 0.0
        %1407 = vmatpush1.msra.mxu0 0.0
        %1408 = vmatprep.subr.mxu0 0.0
        %1409 = vmatpush1.msra.mxu0 0.0
        %1410 = vmatprep.subr.mxu0 0.0
        %1411 = vmatpush1.msra.mxu0 %v1374
        %1412 = vmatprep.subr.mxu0 0.0
        %1413 = vmatpush1.msra.mxu0 %v1373
        %1414 = vmatprep.subr.mxu0 0.0
        %1415 = vmatpush1.msra.mxu0 %v1372
        %1416 = vmatprep.subr.mxu0 0.0
        %1417 = vmatpush1.msra.mxu0 %v1371
        %1418 = vmatprep.subr.mxu0 0.0
        %1419 = vmatpush2.msra.mxu0 0.0
        %1420 = vmatprep.subr.mxu0 0.0
        %1421 = vmatpush2.msra.mxu0 0.0
        %1422 = vmatprep.subr.mxu0 0.0
        %1423 = vmatpush2.msra.mxu0 0.0
        %1424 = vmatprep.subr.mxu0 0.0
        %1425 = vmatpush2.msra.mxu0 0.0
        %1426 = vmatprep.subr.mxu0 0.0
        %1427 = vmatpush2.msra.mxu0 0.0
        %1428 = vmatprep.subr.mxu0 0.0
        %1429 = vmatpush2.msra.mxu0 0.0
        %1430 = vmatprep.subr.mxu0 0.0
        %1431 = vmatpush2.msra.mxu0 0.0
        %1432 = vmatprep.subr.mxu0 0.0
        %1433 = vmatpush2.msra.mxu0 0.0
        %1434 = vmatprep.subr.mxu0 0.0
        %1435 = vmatpush2.msra.mxu0 0.0
        %1436 = vmatprep.subr.mxu0 0.0
        %1437 = vmatpush2.msra.mxu0 0.0
        %1438 = vmatprep.subr.mxu0 0.0
        %1439 = vmatpush2.msra.mxu0 0.0
        %1440 = vmatprep.subr.mxu0 0.0
        %1441 = vmatpush2.msra.mxu0 0.0
        %1442 = vmatprep.subr.mxu0 0.0
        %1443 = vmatpush2.msra.mxu0 0.0
        %1444 = vmatprep.subr.mxu0 0.0
        %1445 = vmatpush2.msra.mxu0 0.0
        %1446 = vmatprep.subr.mxu0 0.0
        %1447 = vmatpush2.msra.mxu0 0.0
        %1448 = vmatprep.subr.mxu0 0.0
        %1449 = vmatpush2.msra.mxu0 0.0
        %1450 = vmatprep.mubr.f32.mxu0 0.0
        %1451 = vmatmul.mubr.f32.gmra.mxu0 %v1382
        %v1452 = vpop.f32.mrf.mxu0
        %v1453 = vadd.f32 %v1379, %v1452
        %v1454 = vpop.f32.mrf.mxu0
        %1455 = vmatprep.mubr.f32.mxu0 0.0
        %1456 = vmatmul.mubr.f32.gmra.mxu0 %v1384
        %v1457 = vpop.f32.mrf.mxu0
        %v1458 = vadd.f32 %v1379, %v1457
        %v1459 = vpop.f32.mrf.mxu0
        %1460 = vdwg.mxu0
        %v1461 = vmax.f32 %v1453, 0.0
        %v1462 = vmax.f32 %v1458, 0.0
        %v1463 = vand.u32 2147483647, %v1453
        %v1464 = vand.u32 2147483647, %v1458
        %v1465 = vsub.f32 0.0, %v1463
        %v1466 = vsub.f32 0.0, %v1464
        %v1467 = vmul.f32 %v1465, 1.442695
        %v1468 = vpow.pop %v1467
        %v1469 = vmul.f32 %v1466, 1.442695
        %v1470 = vpow.pop %v1469
        %v1471 = vadd.f32 %v1468, 1.0
        %v1472 = vlog2.pop %v1471
        %v1473 = vmul.f32 %v1472, 0.6931472
        %v1474 = vmul.f32 -0.5, %v1468
        %v1475 = vadd.f32 %v1474, 1.0
        %v1476 = vmul.f32 %v1475, %v1468
        %v1477 = vand.u32 2147483647, %v1468
        %vm1478 = vcmp.lt.f32.partialorder %v1477, 0.0004427343
        %v1479 = vsel %vm1478, %v1476, %v1473
        %v1480 = vadd.f32 %v1470, 1.0
        %v1481 = vlog2.pop %v1480
        %v1482 = vmul.f32 %v1481, 0.6931472
        %v1483 = vmul.f32 -0.5, %v1470
        %v1484 = vadd.f32 %v1483, 1.0
        %v1485 = vmul.f32 %v1484, %v1470
        %v1486 = vand.u32 2147483647, %v1470
        %vm1487 = vcmp.lt.f32.partialorder %v1486, 0.0004427343
        %v1488 = vsel %vm1487, %v1485, %v1482
        %v1489 = vadd.f32 %v1461, %v1479
        %v1490 = vadd.f32 %v1462, %v1488
        %v1491 = vtanh.pop %v1489
        %v1492 = vtanh.pop %v1490
        %v1493 = vmul.f32 %v1453, %v1491
        %v1494 = vmul.f32 %v1458, %v1492
        %v1495 = vld [vmem:[%s5] sm:$0xff]
        %v1496 = vld [vmem:[%s5 + $0x8] sm:$0xff]
        %v1497 = vld [vmem:[%s5 + $0x10] sm:$0xff]
        %v1498 = vld [vmem:[%s5 + $0x18] sm:$0xff]
        %v1499 = vld [vmem:[%s5 + $0x20] sm:$0xff]
        %v1500 = vld [vmem:[%s5 + $0x28] sm:$0xff]
        %v1501 = vld [vmem:[%s5 + $0x30] sm:$0xff]
        %v1502 = vld [vmem:[%s5 + $0x38] sm:$0xff]
        %v1503 = vld [vmem:[%s5 + $0x40] sm:$0xff]
        %v1504 = vld [vmem:[%s5 + $0x48] sm:$0xff]
        %v1505 = vld [vmem:[%s6] sm:$0x1]
        %v1508 = vrot.slane %v1493, 6
        %v1509 = vrot.slane %v1494, 6
        %v1510 = vsel %vm349, %v1508, %v1509
        %v1513 = vsel %vm349, 0.0, %v1508
        %v1514 = vsel %vm349, %v1509, 0.0
        %v1517 = vrot.slane %v1513, 1
        %v1518 = vrot.slane %v1510, 1
        %v1519 = vsel %vm441, %v1517, %v1518
        %v1520 = vrot.slane %v1514, 1
        %v1521 = vsel %vm441, %v1518, %v1520
        %vm1522 = vcmask 130048
        %v1523 = vsel %vm1522, %v1519, 0
        %v1525 = vsel %vm1522, %v1521, 0
        %1527 = vmatprep.subr.mxu0 0.0
        %1528 = vmatpush1.msra.mxu0 0.0
        %1529 = vmatprep.subr.mxu0 0.0
        %1530 = vmatpush1.msra.mxu0 0.0
        %1531 = vmatprep.subr.mxu0 0.0
        %1532 = vmatpush1.msra.mxu0 0.0
        %1533 = vmatprep.subr.mxu0 0.0
        %1534 = vmatpush1.msra.mxu0 0.0
        %1535 = vmatprep.subr.mxu0 0.0
        %1536 = vmatpush1.msra.mxu0 0.0
        %1537 = vmatprep.subr.mxu0 0.0
        %1538 = vmatpush1.msra.mxu0 0.0
        %1539 = vmatprep.subr.mxu0 0.0
        %1540 = vmatpush1.msra.mxu0 0.0
        %1541 = vmatprep.subr.mxu0 0.0
        %1542 = vmatpush1.msra.mxu0 0.0
        %1543 = vmatprep.subr.mxu0 0.0
        %1544 = vmatpush1.msra.mxu0 0.0
        %1545 = vmatprep.subr.mxu0 0.0
        %1546 = vmatpush1.msra.mxu0 0.0
        %1547 = vmatprep.subr.mxu0 0.0
        %1548 = vmatpush1.msra.mxu0 0.0
        %1549 = vmatprep.subr.mxu0 0.0
        %1550 = vmatpush1.msra.mxu0 0.0
        %1551 = vmatprep.subr.mxu0 0.0
        %1552 = vmatpush1.msra.mxu0 0.0
        %1553 = vmatprep.subr.mxu0 0.0
        %1554 = vmatpush1.msra.mxu0 0.0
        %1555 = vmatprep.subr.mxu0 0.0
        %1556 = vmatpush1.msra.mxu0 %v1498
        %1557 = vmatprep.subr.mxu0 0.0
        %1558 = vmatpush1.msra.mxu0 %v1497
        %1559 = vmatprep.subr.mxu0 0.0
        %1560 = vmatpush2.msra.mxu0 0.0
        %1561 = vmatprep.subr.mxu0 0.0
        %1562 = vmatpush2.msra.mxu0 0.0
        %1563 = vmatprep.subr.mxu0 0.0
        %1564 = vmatpush2.msra.mxu0 0.0
        %1565 = vmatprep.subr.mxu0 0.0
        %1566 = vmatpush2.msra.mxu0 0.0
        %1567 = vmatprep.subr.mxu0 0.0
        %1568 = vmatpush2.msra.mxu0 0.0
        %1569 = vmatprep.subr.mxu0 0.0
        %1570 = vmatpush2.msra.mxu0 0.0
        %1571 = vmatprep.subr.mxu0 0.0
        %1572 = vmatpush2.msra.mxu0 0.0
        %1573 = vmatprep.subr.mxu0 0.0
        %1574 = vmatpush2.msra.mxu0 0.0
        %1575 = vmatprep.subr.mxu0 0.0
        %1576 = vmatpush2.msra.mxu0 0.0
        %1577 = vmatprep.subr.mxu0 0.0
        %1578 = vmatpush2.msra.mxu0 0.0
        %1579 = vmatprep.subr.mxu0 0.0
        %1580 = vmatpush2.msra.mxu0 0.0
        %1581 = vmatprep.subr.mxu0 0.0
        %1582 = vmatpush2.msra.mxu0 0.0
        %1583 = vmatprep.subr.mxu0 0.0
        %1584 = vmatpush2.msra.mxu0 0.0
        %1585 = vmatprep.subr.mxu0 0.0
        %1586 = vmatpush2.msra.mxu0 0.0
        %1587 = vmatprep.subr.mxu0 0.0
        %1588 = vmatpush2.msra.mxu0 0.0
        %1589 = vmatprep.subr.mxu0 0.0
        %1590 = vmatpush2.msra.mxu0 0.0
        %1591 = vmatprep.mubr.f32.mxu0 0.0
        %1592 = vmatmul.mubr.f32.gmra.mxu0 %v1523
        %v1593 = vpop.f32.mrf.mxu0
        %v1594 = vadd.f32 0.0, %v1593
        %v1595 = vpop.f32.mrf.mxu0
        %1596 = vmatprep.mubr.f32.mxu0 0.0
        %1597 = vmatmul.mubr.f32.gmra.mxu0 %v1525
        %v1598 = vpop.f32.mrf.mxu0
        %v1599 = vadd.f32 0.0, %v1598
        %v1600 = vpop.f32.mrf.mxu0
        %1601 = vdwg.mxu0
        %v1602 = vsel %vm1522, %v1513, 0
        %v1604 = vsel %vm1522, %v1510, 0
        %1606 = vmatprep.subr.mxu0 0.0
        %1607 = vmatpush1.msra.mxu0 0.0
        %1608 = vmatprep.subr.mxu0 0.0
        %1609 = vmatpush1.msra.mxu0 0.0
        %1610 = vmatprep.subr.mxu0 0.0
        %1611 = vmatpush1.msra.mxu0 0.0
        %1612 = vmatprep.subr.mxu0 0.0
        %1613 = vmatpush1.msra.mxu0 0.0
        %1614 = vmatprep.subr.mxu0 0.0
        %1615 = vmatpush1.msra.mxu0 0.0
        %1616 = vmatprep.subr.mxu0 0.0
        %1617 = vmatpush1.msra.mxu0 0.0
        %1618 = vmatprep.subr.mxu0 0.0
        %1619 = vmatpush1.msra.mxu0 0.0
        %1620 = vmatprep.subr.mxu0 0.0
        %1621 = vmatpush1.msra.mxu0 0.0
        %1622 = vmatprep.subr.mxu0 0.0
        %1623 = vmatpush1.msra.mxu0 0.0
        %1624 = vmatprep.subr.mxu0 0.0
        %1625 = vmatpush1.msra.mxu0 0.0
        %1626 = vmatprep.subr.mxu0 0.0
        %1627 = vmatpush1.msra.mxu0 0.0
        %1628 = vmatprep.subr.mxu0 0.0
        %1629 = vmatpush1.msra.mxu0 0.0
        %1630 = vmatprep.subr.mxu0 0.0
        %1631 = vmatpush1.msra.mxu0 0.0
        %1632 = vmatprep.subr.mxu0 0.0
        %1633 = vmatpush1.msra.mxu0 0.0
        %1634 = vmatprep.subr.mxu0 0.0
        %1635 = vmatpush1.msra.mxu0 %v1496
        %1636 = vmatprep.subr.mxu0 0.0
        %1637 = vmatpush1.msra.mxu0 %v1495
        %1638 = vmatprep.subr.mxu0 0.0
        %1639 = vmatpush2.msra.mxu0 0.0
        %1640 = vmatprep.subr.mxu0 0.0
        %1641 = vmatpush2.msra.mxu0 0.0
        %1642 = vmatprep.subr.mxu0 0.0
        %1643 = vmatpush2.msra.mxu0 0.0
        %1644 = vmatprep.subr.mxu0 0.0
        %1645 = vmatpush2.msra.mxu0 0.0
        %1646 = vmatprep.subr.mxu0 0.0
        %1647 = vmatpush2.msra.mxu0 0.0
        %1648 = vmatprep.subr.mxu0 0.0
        %1649 = vmatpush2.msra.mxu0 0.0
        %1650 = vmatprep.subr.mxu0 0.0
        %1651 = vmatpush2.msra.mxu0 0.0
        %1652 = vmatprep.subr.mxu0 0.0
        %1653 = vmatpush2.msra.mxu0 0.0
        %1654 = vmatprep.subr.mxu0 0.0
        %1655 = vmatpush2.msra.mxu0 0.0
        %1656 = vmatprep.subr.mxu0 0.0
        %1657 = vmatpush2.msra.mxu0 0.0
        %1658 = vmatprep.subr.mxu0 0.0
        %1659 = vmatpush2.msra.mxu0 0.0
        %1660 = vmatprep.subr.mxu0 0.0
        %1661 = vmatpush2.msra.mxu0 0.0
        %1662 = vmatprep.subr.mxu0 0.0
        %1663 = vmatpush2.msra.mxu0 0.0
        %1664 = vmatprep.subr.mxu0 0.0
        %1665 = vmatpush2.msra.mxu0 0.0
        %1666 = vmatprep.subr.mxu0 0.0
        %1667 = vmatpush2.msra.mxu0 0.0
        %1668 = vmatprep.subr.mxu0 0.0
        %1669 = vmatpush2.msra.mxu0 0.0
        %1670 = vmatprep.mubr.f32.mxu0 0.0
        %1671 = vmatmul.mubr.f32.gmra.mxu0 %v1602
        %v1672 = vpop.f32.mrf.mxu0
        %v1673 = vadd.f32 %v1594, %v1672
        %v1674 = vpop.f32.mrf.mxu0
        %1675 = vmatprep.mubr.f32.mxu0 0.0
        %1676 = vmatmul.mubr.f32.gmra.mxu0 %v1604
        %v1677 = vpop.f32.mrf.mxu0
        %v1678 = vadd.f32 %v1599, %v1677
        %v1679 = vpop.f32.mrf.mxu0
        %1680 = vdwg.mxu0
        %v1681 = vrot.slane %v1513, 2
        %v1682 = vrot.slane %v1510, 2
        %v1683 = vsel %vm497, %v1681, %v1682
        %v1684 = vrot.slane %v1514, 2
        %v1685 = vsel %vm497, %v1682, %v1684
        %v1686 = vsel %vm1522, %v1683, 0
        %v1688 = vsel %vm1522, %v1685, 0
        %1690 = vmatprep.subr.mxu0 0.0
        %1691 = vmatpush1.msra.mxu0 0.0
        %1692 = vmatprep.subr.mxu0 0.0
        %1693 = vmatpush1.msra.mxu0 0.0
        %1694 = vmatprep.subr.mxu0 0.0
        %1695 = vmatpush1.msra.mxu0 0.0
        %1696 = vmatprep.subr.mxu0 0.0
        %1697 = vmatpush1.msra.mxu0 0.0
        %1698 = vmatprep.subr.mxu0 0.0
        %1699 = vmatpush1.msra.mxu0 0.0
        %1700 = vmatprep.subr.mxu0 0.0
        %1701 = vmatpush1.msra.mxu0 0.0
        %1702 = vmatprep.subr.mxu0 0.0
        %1703 = vmatpush1.msra.mxu0 0.0
        %1704 = vmatprep.subr.mxu0 0.0
        %1705 = vmatpush1.msra.mxu0 0.0
        %1706 = vmatprep.subr.mxu0 0.0
        %1707 = vmatpush1.msra.mxu0 0.0
        %1708 = vmatprep.subr.mxu0 0.0
        %1709 = vmatpush1.msra.mxu0 0.0
        %1710 = vmatprep.subr.mxu0 0.0
        %1711 = vmatpush1.msra.mxu0 0.0
        %1712 = vmatprep.subr.mxu0 0.0
        %1713 = vmatpush1.msra.mxu0 0.0
        %1714 = vmatprep.subr.mxu0 0.0
        %1715 = vmatpush1.msra.mxu0 0.0
        %1716 = vmatprep.subr.mxu0 0.0
        %1717 = vmatpush1.msra.mxu0 0.0
        %1718 = vmatprep.subr.mxu0 0.0
        %1719 = vmatpush1.msra.mxu0 %v1500
        %1720 = vmatprep.subr.mxu0 0.0
        %1721 = vmatpush1.msra.mxu0 %v1499
        %1722 = vmatprep.subr.mxu0 0.0
        %1723 = vmatpush2.msra.mxu0 0.0
        %1724 = vmatprep.subr.mxu0 0.0
        %1725 = vmatpush2.msra.mxu0 0.0
        %1726 = vmatprep.subr.mxu0 0.0
        %1727 = vmatpush2.msra.mxu0 0.0
        %1728 = vmatprep.subr.mxu0 0.0
        %1729 = vmatpush2.msra.mxu0 0.0
        %1730 = vmatprep.subr.mxu0 0.0
        %1731 = vmatpush2.msra.mxu0 0.0
        %1732 = vmatprep.subr.mxu0 0.0
        %1733 = vmatpush2.msra.mxu0 0.0
        %1734 = vmatprep.subr.mxu0 0.0
        %1735 = vmatpush2.msra.mxu0 0.0
        %1736 = vmatprep.subr.mxu0 0.0
        %1737 = vmatpush2.msra.mxu0 0.0
        %1738 = vmatprep.subr.mxu0 0.0
        %1739 = vmatpush2.msra.mxu0 0.0
        %1740 = vmatprep.subr.mxu0 0.0
        %1741 = vmatpush2.msra.mxu0 0.0
        %1742 = vmatprep.subr.mxu0 0.0
        %1743 = vmatpush2.msra.mxu0 0.0
        %1744 = vmatprep.subr.mxu0 0.0
        %1745 = vmatpush2.msra.mxu0 0.0
        %1746 = vmatprep.subr.mxu0 0.0
        %1747 = vmatpush2.msra.mxu0 0.0
        %1748 = vmatprep.subr.mxu0 0.0
        %1749 = vmatpush2.msra.mxu0 0.0
        %1750 = vmatprep.subr.mxu0 0.0
        %1751 = vmatpush2.msra.mxu0 0.0
        %1752 = vmatprep.subr.mxu0 0.0
        %1753 = vmatpush2.msra.mxu0 0.0
        %1754 = vmatprep.mubr.f32.mxu0 0.0
        %1755 = vmatmul.mubr.f32.gmra.mxu0 %v1686
        %v1756 = vpop.f32.mrf.mxu0
        %v1757 = vadd.f32 0.0, %v1756
        %v1758 = vpop.f32.mrf.mxu0
        %1759 = vmatprep.mubr.f32.mxu0 0.0
        %1760 = vmatmul.mubr.f32.gmra.mxu0 %v1688
        %v1761 = vpop.f32.mrf.mxu0
        %v1762 = vadd.f32 0.0, %v1761
        %v1763 = vpop.f32.mrf.mxu0
        %1764 = vdwg.mxu0
        %v1765 = vadd.f32 %v1673, %v1757
        %v1766 = vadd.f32 %v1678, %v1762
        %v1767 = vrot.slane %v1513, 3
        %v1768 = vrot.slane %v1510, 3
        %v1769 = vsel %vm553, %v1767, %v1768
        %v1770 = vrot.slane %v1514, 3
        %v1771 = vsel %vm553, %v1768, %v1770
        %v1772 = vsel %vm1522, %v1769, 0
        %v1774 = vsel %vm1522, %v1771, 0
        %1776 = vmatprep.subr.mxu0 0.0
        %1777 = vmatpush1.msra.mxu0 0.0
        %1778 = vmatprep.subr.mxu0 0.0
        %1779 = vmatpush1.msra.mxu0 0.0
        %1780 = vmatprep.subr.mxu0 0.0
        %1781 = vmatpush1.msra.mxu0 0.0
        %1782 = vmatprep.subr.mxu0 0.0
        %1783 = vmatpush1.msra.mxu0 0.0
        %1784 = vmatprep.subr.mxu0 0.0
        %1785 = vmatpush1.msra.mxu0 0.0
        %1786 = vmatprep.subr.mxu0 0.0
        %1787 = vmatpush1.msra.mxu0 0.0
        %1788 = vmatprep.subr.mxu0 0.0
        %1789 = vmatpush1.msra.mxu0 0.0
        %1790 = vmatprep.subr.mxu0 0.0
        %1791 = vmatpush1.msra.mxu0 0.0
        %1792 = vmatprep.subr.mxu0 0.0
        %1793 = vmatpush1.msra.mxu0 0.0
        %1794 = vmatprep.subr.mxu0 0.0
        %1795 = vmatpush1.msra.mxu0 0.0
        %1796 = vmatprep.subr.mxu0 0.0
        %1797 = vmatpush1.msra.mxu0 0.0
        %1798 = vmatprep.subr.mxu0 0.0
        %1799 = vmatpush1.msra.mxu0 0.0
        %1800 = vmatprep.subr.mxu0 0.0
        %1801 = vmatpush1.msra.mxu0 0.0
        %1802 = vmatprep.subr.mxu0 0.0
        %1803 = vmatpush1.msra.mxu0 0.0
        %1804 = vmatprep.subr.mxu0 0.0
        %1805 = vmatpush1.msra.mxu0 %v1502
        %1806 = vmatprep.subr.mxu0 0.0
        %1807 = vmatpush1.msra.mxu0 %v1501
        %1808 = vmatprep.subr.mxu0 0.0
        %1809 = vmatpush2.msra.mxu0 0.0
        %1810 = vmatprep.subr.mxu0 0.0
        %1811 = vmatpush2.msra.mxu0 0.0
        %1812 = vmatprep.subr.mxu0 0.0
        %1813 = vmatpush2.msra.mxu0 0.0
        %1814 = vmatprep.subr.mxu0 0.0
        %1815 = vmatpush2.msra.mxu0 0.0
        %1816 = vmatprep.subr.mxu0 0.0
        %1817 = vmatpush2.msra.mxu0 0.0
        %1818 = vmatprep.subr.mxu0 0.0
        %1819 = vmatpush2.msra.mxu0 0.0
        %1820 = vmatprep.subr.mxu0 0.0
        %1821 = vmatpush2.msra.mxu0 0.0
        %1822 = vmatprep.subr.mxu0 0.0
        %1823 = vmatpush2.msra.mxu0 0.0
        %1824 = vmatprep.subr.mxu0 0.0
        %1825 = vmatpush2.msra.mxu0 0.0
        %1826 = vmatprep.subr.mxu0 0.0
        %1827 = vmatpush2.msra.mxu0 0.0
        %1828 = vmatprep.subr.mxu0 0.0
        %1829 = vmatpush2.msra.mxu0 0.0
        %1830 = vmatprep.subr.mxu0 0.0
        %1831 = vmatpush2.msra.mxu0 0.0
        %1832 = vmatprep.subr.mxu0 0.0
        %1833 = vmatpush2.msra.mxu0 0.0
        %1834 = vmatprep.subr.mxu0 0.0
        %1835 = vmatpush2.msra.mxu0 0.0
        %1836 = vmatprep.subr.mxu0 0.0
        %1837 = vmatpush2.msra.mxu0 0.0
        %1838 = vmatprep.subr.mxu0 0.0
        %1839 = vmatpush2.msra.mxu0 0.0
        %1840 = vmatprep.mubr.f32.mxu0 0.0
        %1841 = vmatmul.mubr.f32.gmra.mxu0 %v1772
        %v1842 = vpop.f32.mrf.mxu0
        %v1843 = vadd.f32 0.0, %v1842
        %v1844 = vpop.f32.mrf.mxu0
        %1845 = vmatprep.mubr.f32.mxu0 0.0
        %1846 = vmatmul.mubr.f32.gmra.mxu0 %v1774
        %v1847 = vpop.f32.mrf.mxu0
        %v1848 = vadd.f32 0.0, %v1847
        %v1849 = vpop.f32.mrf.mxu0
        %1850 = vdwg.mxu0
        %v1851 = vadd.f32 %v1765, %v1843
        %v1852 = vadd.f32 %v1766, %v1848
        %v1853 = vrot.slane %v1513, 4
        %v1854 = vrot.slane %v1510, 4
        %v1855 = vsel %vm609, %v1853, %v1854
        %v1856 = vrot.slane %v1514, 4
        %v1857 = vsel %vm609, %v1854, %v1856
        %v1858 = vsel %vm1522, %v1855, 0
        %v1860 = vsel %vm1522, %v1857, 0
        %1862 = vmatprep.subr.mxu0 0.0
        %1863 = vmatpush1.msra.mxu0 0.0
        %1864 = vmatprep.subr.mxu0 0.0
        %1865 = vmatpush1.msra.mxu0 0.0
        %1866 = vmatprep.subr.mxu0 0.0
        %1867 = vmatpush1.msra.mxu0 0.0
        %1868 = vmatprep.subr.mxu0 0.0
        %1869 = vmatpush1.msra.mxu0 0.0
        %1870 = vmatprep.subr.mxu0 0.0
        %1871 = vmatpush1.msra.mxu0 0.0
        %1872 = vmatprep.subr.mxu0 0.0
        %1873 = vmatpush1.msra.mxu0 0.0
        %1874 = vmatprep.subr.mxu0 0.0
        %1875 = vmatpush1.msra.mxu0 0.0
        %1876 = vmatprep.subr.mxu0 0.0
        %1877 = vmatpush1.msra.mxu0 0.0
        %1878 = vmatprep.subr.mxu0 0.0
        %1879 = vmatpush1.msra.mxu0 0.0
        %1880 = vmatprep.subr.mxu0 0.0
        %1881 = vmatpush1.msra.mxu0 0.0
        %1882 = vmatprep.subr.mxu0 0.0
        %1883 = vmatpush1.msra.mxu0 0.0
        %1884 = vmatprep.subr.mxu0 0.0
        %1885 = vmatpush1.msra.mxu0 0.0
        %1886 = vmatprep.subr.mxu0 0.0
        %1887 = vmatpush1.msra.mxu0 0.0
        %1888 = vmatprep.subr.mxu0 0.0
        %1889 = vmatpush1.msra.mxu0 0.0
        %1890 = vmatprep.subr.mxu0 0.0
        %1891 = vmatpush1.msra.mxu0 %v1504
        %1892 = vmatprep.subr.mxu0 0.0
        %1893 = vmatpush1.msra.mxu0 %v1503
        %1894 = vmatprep.subr.mxu0 0.0
        %1895 = vmatpush2.msra.mxu0 0.0
        %1896 = vmatprep.subr.mxu0 0.0
        %1897 = vmatpush2.msra.mxu0 0.0
        %1898 = vmatprep.subr.mxu0 0.0
        %1899 = vmatpush2.msra.mxu0 0.0
        %1900 = vmatprep.subr.mxu0 0.0
        %1901 = vmatpush2.msra.mxu0 0.0
        %1902 = vmatprep.subr.mxu0 0.0
        %1903 = vmatpush2.msra.mxu0 0.0
        %1904 = vmatprep.subr.mxu0 0.0
        %1905 = vmatpush2.msra.mxu0 0.0
        %1906 = vmatprep.subr.mxu0 0.0
        %1907 = vmatpush2.msra.mxu0 0.0
        %1908 = vmatprep.subr.mxu0 0.0
        %1909 = vmatpush2.msra.mxu0 0.0
        %1910 = vmatprep.subr.mxu0 0.0
        %1911 = vmatpush2.msra.mxu0 0.0
        %1912 = vmatprep.subr.mxu0 0.0
        %1913 = vmatpush2.msra.mxu0 0.0
        %1914 = vmatprep.subr.mxu0 0.0
        %1915 = vmatpush2.msra.mxu0 0.0
        %1916 = vmatprep.subr.mxu0 0.0
        %1917 = vmatpush2.msra.mxu0 0.0
        %1918 = vmatprep.subr.mxu0 0.0
        %1919 = vmatpush2.msra.mxu0 0.0
        %1920 = vmatprep.subr.mxu0 0.0
        %1921 = vmatpush2.msra.mxu0 0.0
        %1922 = vmatprep.subr.mxu0 0.0
        %1923 = vmatpush2.msra.mxu0 0.0
        %1924 = vmatprep.subr.mxu0 0.0
        %1925 = vmatpush2.msra.mxu0 0.0
        %1926 = vmatprep.mubr.f32.mxu0 0.0
        %1927 = vmatmul.mubr.f32.gmra.mxu0 %v1858
        %v1928 = vpop.f32.mrf.mxu0
        %v1929 = vadd.f32 0.0, %v1928
        %v1930 = vpop.f32.mrf.mxu0
        %1931 = vmatprep.mubr.f32.mxu0 0.0
        %1932 = vmatmul.mubr.f32.gmra.mxu0 %v1860
        %v1933 = vpop.f32.mrf.mxu0
        %v1934 = vadd.f32 0.0, %v1933
        %v1935 = vpop.f32.mrf.mxu0
        %1936 = vdwg.mxu0
        %v1937 = vadd.f32 %v1851, %v1929
        %v1938 = vadd.f32 %v1852, %v1934
        %v1940 = vlaneseq
        %v1941 = vshrl.u32 %v1940, 7
        %v1942 = vsub.s32 0, %v1941
        %v1943 = vrot.slane %v1505, %v1942
        %v1945 = vsel %vm1522, %v662, 0
        %1947 = vmatprep.subr.mxu0 0.0
        %1948 = vmatpush1.msra.mxu0 0.0
        %1949 = vmatprep.subr.mxu0 0.0
        %1950 = vmatpush1.msra.mxu0 0.0
        %1951 = vmatprep.subr.mxu0 0.0
        %1952 = vmatpush1.msra.mxu0 0.0
        %1953 = vmatprep.subr.mxu0 0.0
        %1954 = vmatpush1.msra.mxu0 0.0
        %1955 = vmatprep.subr.mxu0 0.0
        %1956 = vmatpush1.msra.mxu0 0.0
        %1957 = vmatprep.subr.mxu0 0.0
        %1958 = vmatpush1.msra.mxu0 0.0
        %1959 = vmatprep.subr.mxu0 0.0
        %1960 = vmatpush1.msra.mxu0 0.0
        %1961 = vmatprep.subr.mxu0 0.0
        %1962 = vmatpush1.msra.mxu0 0.0
        %1963 = vmatprep.subr.mxu0 0.0
        %1964 = vmatpush1.msra.mxu0 0.0
        %1965 = vmatprep.subr.mxu0 0.0
        %1966 = vmatpush1.msra.mxu0 0.0
        %1967 = vmatprep.subr.mxu0 0.0
        %1968 = vmatpush1.msra.mxu0 0.0
        %1969 = vmatprep.subr.mxu0 0.0
        %1970 = vmatpush1.msra.mxu0 0.0
        %1971 = vmatprep.subr.mxu0 0.0
        %1972 = vmatpush1.msra.mxu0 0.0
        %1973 = vmatprep.subr.mxu0 0.0
        %1974 = vmatpush1.msra.mxu0 0.0
        %1975 = vmatprep.subr.mxu0 0.0
        %1976 = vmatpush1.msra.mxu0 %v1938
        %1977 = vmatprep.subr.mxu0 0.0
        %1978 = vmatpush1.msra.mxu0 %v1937
        %1979 = vmatprep.subr.mxu0 0.0
        %1980 = vmatpush2.msra.mxu0 0.0
        %1981 = vmatprep.subr.mxu0 0.0
        %1982 = vmatpush2.msra.mxu0 0.0
        %1983 = vmatprep.subr.mxu0 0.0
        %1984 = vmatpush2.msra.mxu0 0.0
        %1985 = vmatprep.subr.mxu0 0.0
        %1986 = vmatpush2.msra.mxu0 0.0
        %1987 = vmatprep.subr.mxu0 0.0
        %1988 = vmatpush2.msra.mxu0 0.0
        %1989 = vmatprep.subr.mxu0 0.0
        %1990 = vmatpush2.msra.mxu0 0.0
        %1991 = vmatprep.subr.mxu0 0.0
        %1992 = vmatpush2.msra.mxu0 0.0
        %1993 = vmatprep.subr.mxu0 0.0
        %1994 = vmatpush2.msra.mxu0 0.0
        %1995 = vmatprep.subr.mxu0 0.0
        %1996 = vmatpush2.msra.mxu0 0.0
        %1997 = vmatprep.subr.mxu0 0.0
        %1998 = vmatpush2.msra.mxu0 0.0
        %1999 = vmatprep.subr.mxu0 0.0
        %2000 = vmatpush2.msra.mxu0 0.0
        %2001 = vmatprep.subr.mxu0 0.0
        %2002 = vmatpush2.msra.mxu0 0.0
        %2003 = vmatprep.subr.mxu0 0.0
        %2004 = vmatpush2.msra.mxu0 0.0
        %2005 = vmatprep.subr.mxu0 0.0
        %2006 = vmatpush2.msra.mxu0 0.0
        %2007 = vmatprep.subr.mxu0 0.0
        %2008 = vmatpush2.msra.mxu0 0.0
        %2009 = vmatprep.subr.mxu0 0.0
        %2010 = vmatpush2.msra.mxu0 0.0
        %2011 = vmatprep.mubr.f32.mxu0 0.0
        %2012 = vmatmul.mubr.f32.gmra.mxu0 %v1945
        %v2013 = vpop.f32.mrf.mxu0
        %v2014 = vadd.f32 %v1943, %v2013
        %v2015 = vpop.f32.mrf.mxu0
        %2016 = vdwg.mxu0
        %v2017 = vmax.f32 %v2014, 0.0
        %v2018 = vand.u32 2147483647, %v2014
        %v2019 = vsub.f32 0.0, %v2018
        %v2020 = vmul.f32 %v2019, 1.442695
        %v2021 = vpow.pop %v2020
        %v2022 = vadd.f32 %v2021, 1.0
        %v2023 = vlog2.pop %v2022
        %v2024 = vmul.f32 %v2023, 0.6931472
        %v2025 = vmul.f32 -0.5, %v2021
        %v2026 = vadd.f32 %v2025, 1.0
        %v2027 = vmul.f32 %v2026, %v2021
        %v2028 = vand.u32 2147483647, %v2021
        %vm2029 = vcmp.lt.f32.partialorder %v2028, 0.0004427343
        %v2030 = vsel %vm2029, %v2027, %v2024
        %v2031 = vadd.f32 %v2017, %v2030
        %v2032 = vtanh.pop %v2031
        %v2033 = vmul.f32 %v2014, %v2032
        %v2034 = vld [vmem:[%s7] sm:$0xff]
        %v2035 = vld [vmem:[%s7 + $0x8] sm:$0xff]
        %v2036 = vld [vmem:[%s7 + $0x10] sm:$0xff]
        %v2037 = vld [vmem:[%s7 + $0x18] sm:$0xff]
        %v2038 = vld [vmem:[%s8] sm:$0x1]
        %v2040 = vlaneseq
        %v2041 = vshrl.u32 %v2040, 7
        %v2042 = vsub.s32 0, %v2041
        %v2043 = vrot.slane %v2038, %v2042
        %v2046 = vsel %vm1381, %v2033, 0
        %2048 = vmatprep.subr.mxu0 0.0
        %2049 = vmatpush1.msra.mxu0 0.0
        %2050 = vmatprep.subr.mxu0 0.0
        %2051 = vmatpush1.msra.mxu0 0.0
        %2052 = vmatprep.subr.mxu0 0.0
        %2053 = vmatpush1.msra.mxu0 0.0
        %2054 = vmatprep.subr.mxu0 0.0
        %2055 = vmatpush1.msra.mxu0 0.0
        %2056 = vmatprep.subr.mxu0 0.0
        %2057 = vmatpush1.msra.mxu0 0.0
        %2058 = vmatprep.subr.mxu0 0.0
        %2059 = vmatpush1.msra.mxu0 0.0
        %2060 = vmatprep.subr.mxu0 0.0
        %2061 = vmatpush1.msra.mxu0 0.0
        %2062 = vmatprep.subr.mxu0 0.0
        %2063 = vmatpush1.msra.mxu0 0.0
        %2064 = vmatprep.subr.mxu0 0.0
        %2065 = vmatpush1.msra.mxu0 0.0
        %2066 = vmatprep.subr.mxu0 0.0
        %2067 = vmatpush1.msra.mxu0 0.0
        %2068 = vmatprep.subr.mxu0 0.0
        %2069 = vmatpush1.msra.mxu0 0.0
        %2070 = vmatprep.subr.mxu0 0.0
        %2071 = vmatpush1.msra.mxu0 0.0
        %2072 = vmatprep.subr.mxu0 0.0
        %2073 = vmatpush1.msra.mxu0 %v2037
        %2074 = vmatprep.subr.mxu0 0.0
        %2075 = vmatpush1.msra.mxu0 %v2036
        %2076 = vmatprep.subr.mxu0 0.0
        %2077 = vmatpush1.msra.mxu0 %v2035
        %2078 = vmatprep.subr.mxu0 0.0
        %2079 = vmatpush1.msra.mxu0 %v2034
        %2080 = vmatprep.subr.mxu0 0.0
        %2081 = vmatpush2.msra.mxu0 0.0
        %2082 = vmatprep.subr.mxu0 0.0
        %2083 = vmatpush2.msra.mxu0 0.0
        %2084 = vmatprep.subr.mxu0 0.0
        %2085 = vmatpush2.msra.mxu0 0.0
        %2086 = vmatprep.subr.mxu0 0.0
        %2087 = vmatpush2.msra.mxu0 0.0
        %2088 = vmatprep.subr.mxu0 0.0
        %2089 = vmatpush2.msra.mxu0 0.0
        %2090 = vmatprep.subr.mxu0 0.0
        %2091 = vmatpush2.msra.mxu0 0.0
        %2092 = vmatprep.subr.mxu0 0.0
        %2093 = vmatpush2.msra.mxu0 0.0
        %2094 = vmatprep.subr.mxu0 0.0
        %2095 = vmatpush2.msra.mxu0 0.0
        %2096 = vmatprep.subr.mxu0 0.0
        %2097 = vmatpush2.msra.mxu0 0.0
        %2098 = vmatprep.subr.mxu0 0.0
        %2099 = vmatpush2.msra.mxu0 0.0
        %2100 = vmatprep.subr.mxu0 0.0
        %2101 = vmatpush2.msra.mxu0 0.0
        %2102 = vmatprep.subr.mxu0 0.0
        %2103 = vmatpush2.msra.mxu0 0.0
        %2104 = vmatprep.subr.mxu0 0.0
        %2105 = vmatpush2.msra.mxu0 0.0
        %2106 = vmatprep.subr.mxu0 0.0
        %2107 = vmatpush2.msra.mxu0 0.0
        %2108 = vmatprep.subr.mxu0 0.0
        %2109 = vmatpush2.msra.mxu0 0.0
        %2110 = vmatprep.subr.mxu0 0.0
        %2111 = vmatpush2.msra.mxu0 0.0
        %2112 = vmatprep.mubr.f32.mxu0 0.0
        %2113 = vmatmul.mubr.f32.gmra.mxu0 %v2046
        %v2114 = vpop.f32.mrf.mxu0
        %v2115 = vadd.f32 %v2043, %v2114
        %v2116 = vpop.f32.mrf.mxu0
        %2117 = vdwg.mxu0
        %vm2118 = vcmp.ge.s32.totalorder %v644, 2
        %vm2119 = vcmp.ge.s32.totalorder %v645, 2
        %v2120 = vsel %vm2118, 1, 0
        %v2121 = vsel %vm2119, 1, 0
        %vm2122 = vcmp.ge.s32.totalorder %v649, 2
        %v2123 = vsel %vm2122, 1, 0
        %vm2124 = vcmp.ge.s32.totalorder %v644, 6
        %vm2125 = vcmp.ge.s32.totalorder %v645, 6
        %v2126 = vsel %vm2124, 1, 0
        %v2127 = vsel %vm2125, 1, 0
        %v2128 = vadd.s32 %v2120, %v2126
        %v2129 = vadd.s32 %v2121, %v2127
        %vm2130 = vcmp.ge.s32.totalorder %v649, 6
        %v2131 = vsel %vm2130, 1, 0
        %v2132 = vadd.s32 %v2123, %v2131
        %vm2133 = vcmp.eq.s32.totalorder %v2128, %v2132
        %vm2134 = vcmp.eq.s32.totalorder %v2129, %v2132
        %v2135 = vsel %vm2133, 1, 0
        %v2136 = vsel %vm2134, 1, 0
        %v2137 = vcvt.s32.f32 %v2135
        %v2138 = vcvt.s32.f32 %v2136
        %v2139 = vmul.f32 %v2115, %v2115
        %v2141 = vsel %vm1522, %v2139, 0
        %2143 = vmatprep.subr.mxu0 0.0
        %2144 = vmatpush1.msra.mxu0 0.0
        %2145 = vmatprep.subr.mxu0 0.0
        %2146 = vmatpush1.msra.mxu0 0.0
        %2147 = vmatprep.subr.mxu0 0.0
        %2148 = vmatpush1.msra.mxu0 0.0
        %2149 = vmatprep.subr.mxu0 0.0
        %2150 = vmatpush1.msra.mxu0 0.0
        %2151 = vmatprep.subr.mxu0 0.0
        %2152 = vmatpush1.msra.mxu0 0.0
        %2153 = vmatprep.subr.mxu0 0.0
        %2154 = vmatpush1.msra.mxu0 0.0
        %2155 = vmatprep.subr.mxu0 0.0
        %2156 = vmatpush1.msra.mxu0 0.0
        %2157 = vmatprep.subr.mxu0 0.0
        %2158 = vmatpush1.msra.mxu0 0.0
        %2159 = vmatprep.subr.mxu0 0.0
        %2160 = vmatpush1.msra.mxu0 0.0
        %2161 = vmatprep.subr.mxu0 0.0
        %2162 = vmatpush1.msra.mxu0 0.0
        %2163 = vmatprep.subr.mxu0 0.0
        %2164 = vmatpush1.msra.mxu0 0.0
        %2165 = vmatprep.subr.mxu0 0.0
        %2166 = vmatpush1.msra.mxu0 0.0
        %2167 = vmatprep.subr.mxu0 0.0
        %2168 = vmatpush1.msra.mxu0 0.0
        %2169 = vmatprep.subr.mxu0 0.0
        %2170 = vmatpush1.msra.mxu0 0.0
        %2171 = vmatprep.subr.mxu0 0.0
        %2172 = vmatpush1.msra.mxu0 %v2138
        %2173 = vmatprep.subr.mxu0 0.0
        %2174 = vmatpush1.msra.mxu0 %v2137
        %2175 = vmatprep.subr.mxu0 0.0
        %2176 = vmatpush2.msra.mxu0 0.0
        %2177 = vmatprep.subr.mxu0 0.0
        %2178 = vmatpush2.msra.mxu0 0.0
        %2179 = vmatprep.subr.mxu0 0.0
        %2180 = vmatpush2.msra.mxu0 0.0
        %2181 = vmatprep.subr.mxu0 0.0
        %2182 = vmatpush2.msra.mxu0 0.0
        %2183 = vmatprep.subr.mxu0 0.0
        %2184 = vmatpush2.msra.mxu0 0.0
        %2185 = vmatprep.subr.mxu0 0.0
        %2186 = vmatpush2.msra.mxu0 0.0
        %2187 = vmatprep.subr.mxu0 0.0
        %2188 = vmatpush2.msra.mxu0 0.0
        %2189 = vmatprep.subr.mxu0 0.0
        %2190 = vmatpush2.msra.mxu0 0.0
        %2191 = vmatprep.subr.mxu0 0.0
        %2192 = vmatpush2.msra.mxu0 0.0
        %2193 = vmatprep.subr.mxu0 0.0
        %2194 = vmatpush2.msra.mxu0 0.0
        %2195 = vmatprep.subr.mxu0 0.0
        %2196 = vmatpush2.msra.mxu0 0.0
        %2197 = vmatprep.subr.mxu0 0.0
        %2198 = vmatpush2.msra.mxu0 0.0
        %2199 = vmatprep.subr.mxu0 0.0
        %2200 = vmatpush2.msra.mxu0 0.0
        %2201 = vmatprep.subr.mxu0 0.0
        %2202 = vmatpush2.msra.mxu0 0.0
        %2203 = vmatprep.subr.mxu0 0.0
        %2204 = vmatpush2.msra.mxu0 0.0
        %2205 = vmatprep.subr.mxu0 0.0
        %2206 = vmatpush2.msra.mxu0 0.0
        %2207 = vmatprep.mubr.f32.mxu0 0.0
        %2208 = vmatmul.mubr.f32.gmra.mxu0 %v2141
        %v2209 = vpop.f32.mrf.mxu0
        %v2210 = vadd.f32 0.0, %v2209
        %v2211 = vpop.f32.mrf.mxu0
        %2212 = vdwg.mxu0
        %v2213 = vmax.f32 %v2210, 1e-24
        %v2214 = vrsqrt.pop %v2213
        %v2215 = vmul.f32 %v2115, %v2214
        %2216 = vst.msk [vmem:[%s325] sm:$0xff] %vm1522, %v2215
        %s2217 = sand.u32 %s225, 1
        %s2218 = scalar_lea.sflag [#allocation3], %s2217
        %s2219 = sand.u32 %s225, 1
        %s2220 = smul.addr %s2219, 8
        %s2221 = scalar_lea.vmem [#allocation2], %s2220
        // Predicated region
        $region57: #{_lambda_.1} parent=55 // pred_check
          %p2222 = pneg %p235
        $region58: #{_lambda_.1} parent=55 // pred_check_branch
          %2224 = sbr.rel (%p2222) target = $region60
        $region59: #{_lambda_.1} parent=55 // pred_region
          %s2226 = ssub.s32 128, 128
          %2227 = vsyncadd %s2218, %s2226
          %s2228 = smul.addr %s23, 128
          %s2229 = scalar_lea.hbm %s9, %s2228
          %s2231 = sshll.u32 %s2221, 4
          %s2232 = int_to_ptr.vmem [resolvable:$true] %s2231
          %2234 = dma.vmem_to_hbm [thread:$0]  %s2232, 128, %s2229, %s2218
        $region60: #{_lambda_.1} parent=55 // pred_fallthru
          _
      $region56: #{_lambda_.1} parent=5 // pred_fallthru
        _
      %p2235 = scmp.le.s32.totalorder 2, %s18
      // Predicated region
      $region61: #{_lambda_.1} parent=5 // pred_check
        %p2236 = pneg %p2235
      $region62: #{_lambda_.1} parent=5 // pred_check_branch
        %2238 = sbr.rel (%p2236) target = $region64
      $region63: #{_lambda_.1} parent=5 // pred_region
        %s2239 = ssub.s32 %s18, 2
        // Predicated region
        $region65: #{_lambda_.1} parent=63 // pred_check
          %p2240 = pneg %p241
        $region66: #{_lambda_.1} parent=63 // pred_check_branch
          %2242 = sbr.rel (%p2240) target = $region68
        $region67: #{_lambda_.1} parent=63 // pred_region
          %s2243 = sand.u32 %s226, 1
          %s2244 = scalar_lea.sflag [#allocation3], %s2243
          %s2245 = sand.u32 %s226, 1
          %s2246 = smul.addr %s2245, 8
          %s2247 = scalar_lea.vmem [#allocation2], %s2246
          %2248 = dma.done %s2244, 128
        $region68: #{_lambda_.1} parent=63 // pred_fallthru
          _
      $region64: #{_lambda_.1} parent=5 // pred_fallthru
        _
    $region6: #{_lambda_.1} parent=1 // loop_footer
      %s22 = sadd.s32 1, %s18
    $region7: #{_lambda_.1} parent=1 // loop_footer_branch
      %17 = sbr.rel target = $region3
    $region8: #{_lambda_.1} parent=1 // loop_exit
      _
    %2249 = vsyncpa [#allocation3], 1
    %s2250 = scalar_lea.sflag [#allocation3], 1
    %2251 = vsyncpa %s2250, 1

</llo_original>
